<compile_context>
chip_gen: v7x
topology: tpu7x:2x2x1
jax: 0.10.0
libtpu: 0.0.40
codegen_flags: <defaults>
</compile_context>

<pallas_src>
import functools

import jax
import jax.numpy as jnp
from jax import lax
from jax.experimental import pallas as pl
from jax.experimental.pallas import tpu as pltpu


# ----------------------------------------------------------------------------
# Fused kernel: one image x one H-block per grid step.
#   3x3 conv (pad=1, stride=1, BN folded into weights) + LeakyReLU(0.1)
#   + 1x1 conv + bias.
# ----------------------------------------------------------------------------
def _tiny_yolov2_kernel(x_ref, w3_ref, b3_ref, w1_ref, b1_ref, out_ref,
                        xs_ref, acc_ref, *, W, th, C_in, C_mid, C_out_p,
                        neg_slope):
    # x_ref  : (H, W, C_in)            bf16  full image (re-used across h steps)
    # w3_ref : (3, 3*C_in, C_mid)      bf16  3x3 weights, kw fused into K
    # b3_ref : (1, C_mid)              f32   folded BN shift
    # w1_ref : (C_mid, C_out_p)        bf16  1x1 weights (C_out padded to 128)
    # b1_ref : (1, C_out_p)            f32
    # out_ref: (th, W, C_out_p)        bf16  this H-block's output rows
    # xs_ref : (th+2, W, 3*C_in)       bf16  scratch: halo'd kw-interleaved rows
    # acc_ref: (th*W, C_mid)           f32   scratch: conv accumulator
    h = pl.program_id(1)
    nh = pl.num_programs(1)
    r0 = pl.multiple_of(h * th, th)         # first output row of this block
    dt = xs_ref.dtype

    def write_band(dst, rows):
        # rows: (nr, W, C_in) -> the three kw-shifted copies, interleaved on
        # the lane axis. Only the shifted edge columns are left untouched
        # (zeroed once below).
        xs_ref[dst, :, C_in:2 * C_in] = rows                           # kw = 1
        xs_ref[dst, 1:W, 0:C_in] = rows[:, 0:W - 1, :]                 # kw = 0
        xs_ref[dst, 0:W - 1, 2 * C_in:3 * C_in] = rows[:, 1:W, :]      # kw = 2

    # interior rows of this block (always valid)
    write_band(slice(1, th + 1), x_ref[pl.ds(r0, th), :, :])

    # top halo row (scratch row 0)
    @pl.when(h == 0)
    def _():
        xs_ref[0:1, :, :] = jnp.zeros((1, W, 3 * C_in), dt)

    @pl.when(h > 0)
    def _():
        write_band(slice(0, 1), x_ref[pl.ds(r0 - 1, 1), :, :])

    # bottom halo row (scratch row th+1)
    @pl.when(h == nh - 1)
    def _():
        xs_ref[th + 1:th + 2, :, :] = jnp.zeros((1, W, 3 * C_in), dt)

    @pl.when(h < nh - 1)
    def _():
        write_band(slice(th + 1, th + 2), x_ref[pl.ds(r0 + th, 1), :, :])

    # zero only the kw-shift edge columns (disjoint from the band writes)
    xs_ref[:, 0:1, 0:C_in] = jnp.zeros((th + 2, 1, C_in), dt)
    xs_ref[:, W - 1:W, 2 * C_in:3 * C_in] = jnp.zeros((th + 2, 1, C_in), dt)

    # --- 3x3 conv as 3 MXU matmuls with K = 3*C_in (f32 accumulation) ---
    # TODO(synk): at real TinyYolov2 scale (C_in = C_mid = 1024) add a C_mid
    # reduction grid axis ("arbitrary") with pl.when init/finalize so the
    # weights + accumulator fit v7x's 64 MiB VMEM.
    M = th * W
    p = xs_ref[0:th, :, :].reshape(M, 3 * C_in)
    acc_ref[...] = jnp.dot(p, w3_ref[0], preferred_element_type=jnp.float32)
    for kh in (1, 2):
        p = xs_ref[kh:kh + th, :, :].reshape(M, 3 * C_in)
        acc_ref[...] += jnp.dot(p, w3_ref[kh],
                                preferred_element_type=jnp.float32)

    # folded BN shift + LeakyReLU(0.1)  (BN scale already folded into w3)
    y = acc_ref[...] + b3_ref[...]
    y = jnp.where(y > 0, y, neg_slope * y)

    # 1x1 conv == channel matmul (lane-dense 128-wide N), plus bias
    out = jnp.dot(y.astype(jnp.bfloat16), w1_ref[...],
                  preferred_element_type=jnp.float32) + b1_ref[...]
    out_ref[...] = out.reshape(th, W, C_out_p).astype(out_ref.dtype)


def _pick_h_block(H, W_p, n_imgs, target_rows=256, min_steps=4):
    """Divisor th of H: rows per step ~target, but keep >= min_steps grid steps."""
    divisors = sorted(d for d in range(1, H + 1) if H % d == 0)
    th = next((d for d in divisors if d * W_p >= target_rows), H)
    while n_imgs * (H // th) < min_steps:
        smaller = [d for d in divisors if d < th and d * W_p >= min(128, target_rows)]
        if not smaller:
            break
        th = smaller[-1]
    return th


def _vmem_limit_bytes():
    """Per-generation scoped-VMEM limit (None -> compiler default)."""
    try:
        kind = jax.devices()[0].device_kind.lower()
    except Exception:  # pragma: no cover
        return None
    if "v7" in kind or "tpu7" in kind:
        return 48 << 20       # stay clear of v7x's 64 MiB physical VMEM
    if "v6" in kind:
        return 96 << 20
    if "v5" in kind:
        return 64 << 20
    return None


def tiny_yolov2_head(x_nchw, w3_oihw, bn_gamma, bn_beta, bn_mean, bn_var,
                     w1_oihw, b1, *, eps=1e-5, neg_slope=0.1):
    """Pallas implementation of TinyYolov2.forward applied to stage6 = x_nchw."""
    N, C_in, H, W = x_nchw.shape
    C_mid = w3_oihw.shape[0]
    C_out = w1_oihw.shape[0]
    C_out_p = ((C_out + 127) // 128) * 128          # lane-dense output width
    W_p = ((W + 7) // 8) * 8                        # sublane-aligned width

    # ---- glue: layout + parameter folding (plain JAX) ----
    # TODO(synk): if the surrounding model is NHWC end-to-end, accept/emit NHWC
    # directly and drop these full-array transposes.
    x_nhwc = jnp.transpose(x_nchw, (0, 2, 3, 1)).astype(jnp.bfloat16)
    if W_p != W:
        x_nhwc = jnp.pad(x_nhwc, ((0, 0), (0, 0), (0, W_p - W), (0, 0)))

    # Fold BatchNorm (inference) into the 3x3 conv; fuse kw into K = 3*C_in.
    scale = bn_gamma / jnp.sqrt(bn_var + eps)                         # (C_mid,)
    shift = bn_beta - bn_mean * scale                                 # (C_mid,)
    w3_hwio = jnp.transpose(w3_oihw, (2, 3, 1, 0)).astype(jnp.float32)  # (3,3,Cin,Cmid)
    w3_fused = (w3_hwio * scale[None, None, None, :]
                ).reshape(3, 3 * C_in, C_mid).astype(jnp.bfloat16)
    b3 = shift.reshape(1, C_mid).astype(jnp.float32)

    # 1x1 conv weights / bias, zero-padded to 128 output lanes.
    w1_io = jnp.transpose(w1_oihw[:, :, 0, 0], (1, 0)).astype(jnp.float32)
    w1_p = jnp.zeros((C_mid, C_out_p), jnp.float32).at[:, :C_out].set(w1_io)
    w1_p = w1_p.astype(jnp.bfloat16)
    b1_p = jnp.zeros((1, C_out_p), jnp.float32).at[0, :C_out].set(
        b1.astype(jnp.float32))

    # Grid: one image x one H-block per step (>= 4 steps -> pipelining + both
    # TensorCores on v7x). The full-image input block index is constant along
    # the inner h axis, so its DMA is not repeated per H-block.
    th = _pick_h_block(H, W_p, N)
    nh = H // th
    grid = (N, nh)

    kernel = functools.partial(_tiny_yolov2_kernel, W=W_p, th=th,
                               C_in=C_in, C_mid=C_mid, C_out_p=C_out_p,
                               neg_slope=neg_slope)

    flops = 2 * N * H * W_p * C_mid * (9 * C_in + C_out_p)
    bytes_accessed = (x_nhwc.size * 2 + w3_fused.size * 2 + b3.size * 4 +
                      w1_p.size * 2 + b1_p.size * 4 +
                      N * H * W_p * C_out_p * 2)

    # TODO(synk): mark the constant-index weight operands single-buffered
    # (pipeline_mode=pl.Buffered(1)) once verified on all target generations.
    out_nhwc = pl.pallas_call(
        kernel,
        out_shape=jax.ShapeDtypeStruct((N, H, W_p, C_out_p), jnp.bfloat16),
        grid_spec=pltpu.PrefetchScalarGridSpec(
            num_scalar_prefetch=0,
            grid=grid,
            in_specs=[
                pl.BlockSpec((None, H, W_p, C_in), lambda n, h: (n, 0, 0, 0)),
                pl.BlockSpec((3, 3 * C_in, C_mid), lambda n, h: (0, 0, 0)),
                pl.BlockSpec((1, C_mid), lambda n, h: (0, 0)),
                pl.BlockSpec((C_mid, C_out_p), lambda n, h: (0, 0)),
                pl.BlockSpec((1, C_out_p), lambda n, h: (0, 0)),
            ],
            out_specs=pl.BlockSpec((None, th, W_p, C_out_p),
                                   lambda n, h: (n, h, 0, 0)),
            scratch_shapes=[
                pltpu.VMEM((th + 2, W_p, 3 * C_in), jnp.bfloat16),
                pltpu.VMEM((th * W_p, C_mid), jnp.float32),
            ],
        ),
        compiler_params=pltpu.CompilerParams(
            dimension_semantics=("parallel", "parallel"),
            vmem_limit_bytes=_vmem_limit_bytes()),
        cost_estimate=pl.CostEstimate(flops=flops, transcendentals=0,
                                      bytes_accessed=bytes_accessed),
    )(x_nhwc, w3_fused, b3, w1_p, b1_p)

    # drop padded lanes/columns, back to NCHW to mirror the PyTorch module
    out = out_nhwc[:, :, :W, :C_out]
    return jnp.transpose(out, (0, 3, 1, 2))


# ----------------------------------------------------------------------------
# Pure-JAX reference (for correctness check).
# ----------------------------------------------------------------------------
def reference_head(x_nchw, w3_oihw, bn_gamma, bn_beta, bn_mean, bn_var,
                   w1_oihw, b1, *, eps=1e-5, neg_slope=0.1):
    y = lax.conv_general_dilated(
        x_nchw.astype(jnp.float32), w3_oihw.astype(jnp.float32),
        window_strides=(1, 1), padding=((1, 1), (1, 1)),
        dimension_numbers=("NCHW", "OIHW", "NCHW"))
    scale = (bn_gamma / jnp.sqrt(bn_var + eps)).reshape(1, -1, 1, 1)
    shift = (bn_beta - bn_mean * (bn_gamma / jnp.sqrt(bn_var + eps))
             ).reshape(1, -1, 1, 1)
    y = y * scale + shift
    y = jnp.where(y > 0, y, neg_slope * y)
    out = lax.conv_general_dilated(
        y, w1_oihw.astype(jnp.float32),
        window_strides=(1, 1), padding=((0, 0), (0, 0)),
        dimension_numbers=("NCHW", "OIHW", "NCHW"))
    return out + b1.reshape(1, -1, 1, 1)


class TinyYolov2Pallas:
    """Mirror of the PyTorch TinyYolov2 head with scaled-down channels.

    Original: Conv2dBatchLeaky(1024, 1024, 3, 1) -> Conv2d(1024, A*(5+C), 1).
    Here the 1024 channels are scaled to `channels` to keep the synthetic
    example small; structure and forward semantics are identical. Output is
    bf16 (the kernel's lane-dense writeback dtype).
    """

    def __init__(self, num_anchors, num_classes, channels=128, key=None):
        if key is None:
            key = jax.random.PRNGKey(0)
        c = channels
        c_out = num_anchors * (5 + num_classes)
        k = jax.random.split(key, 6)
        self.w3 = jax.random.normal(k[0], (c, c, 3, 3), jnp.float32) * 0.05   # OIHW
        self.bn_gamma = 1.0 + 0.1 * jax.random.normal(k[1], (c,), jnp.float32)
        self.bn_beta = 0.1 * jax.random.normal(k[2], (c,), jnp.float32)
        self.bn_mean = 0.1 * jax.random.normal(k[3], (c,), jnp.float32)
        self.bn_var = jnp.abs(1.0 + 0.1 * jax.random.normal(k[4], (c,), jnp.float32))
        self.w1 = jax.random.normal(k[5], (c_out, c, 1, 1), jnp.float32) * 0.05  # OIHW
        self.b1 = 0.01 * jnp.arange(c_out, dtype=jnp.float32)

    def forward(self, middle_feats):
        stage6 = middle_feats[0]
        out = tiny_yolov2_head(stage6, self.w3, self.bn_gamma, self.bn_beta,
                               self.bn_mean, self.bn_var, self.w1, self.b1)
        features = [out]
        return features

    def forward_ref(self, middle_feats):
        stage6 = middle_feats[0]
        return [reference_head(stage6, self.w3, self.bn_gamma, self.bn_beta,
                               self.bn_mean, self.bn_var, self.w1, self.b1)]


if __name__ == "__main__":
    num_anchors, num_classes = 5, 20         # -> 125 output channels (padded to 128 internally)
    N, C, H, W = 2, 128, 16, 16              # small stand-in for (N, 1024, H, W)

    key = jax.random.PRNGKey(0)
    kx, kp = jax.random.split(key)
    x = jax.random.normal(kx, (N, C, H, W), jnp.float32)

    model = TinyYolov2Pallas(num_anchors, num_classes, channels=C, key=kp)

    feats = model.forward([x])
    out = jax.block_until_ready(feats[0])

    ref = jax.block_until_ready(model.forward_ref([x])[0])
    assert out.shape == (N, num_anchors * (5 + num_classes), H, W), out.shape
    out_f32 = out.astype(jnp.float32)
    max_err = float(jnp.max(jnp.abs(out_f32 - ref)))
    # bf16 matmul operands + bf16 output (f32 accumulation) vs full-f32 ref.
    assert jnp.allclose(out_f32, ref, atol=1e-1, rtol=1e-1), max_err

    print("KERNEL_OK")
</pallas_src>

<mosaic_0001>
module attributes {stable_mosaic.version = 11 : i64} {
  func.func @_tiny_yolov2_kernel(%arg0: i32, %arg1: i32, %arg2: memref<1x16x16x128xbf16, #tpu.memory_space<vmem>>, %arg3: memref<3x384x128xbf16, #tpu.memory_space<vmem>>, %arg4: memref<1x128xf32, #tpu.memory_space<vmem>>, %arg5: memref<128x128xbf16, #tpu.memory_space<vmem>>, %arg6: memref<1x128xf32, #tpu.memory_space<vmem>>, %arg7: memref<1x8x16x128xbf16, #tpu.memory_space<vmem>>, %arg8: memref<10x16x384xbf16, #tpu.memory_space<vmem>>, %arg9: memref<128x128xf32, #tpu.memory_space<vmem>>) attributes {dimension_semantics = [#tpu.dimension_semantics<parallel>, #tpu.dimension_semantics<parallel>], iteration_bounds = array<i64: 2, 2>, scalar_prefetch = 0 : i64, scratch_operands = 2 : i64, tpu.core_type = #tpu.core_type<tc>, window_params = [{transform_indices = @transform_0, window_bounds = array<i64: 1, 16, 16, 128>}, {pipeline_mode = #tpu.pipeline_mode<synchronous>, transform_indices = @transform_1, window_bounds = array<i64: 3, 384, 128>}, {pipeline_mode = #tpu.pipeline_mode<synchronous>, transform_indices = @transform_2, window_bounds = array<i64: 1, 128>}, {pipeline_mode = #tpu.pipeline_mode<synchronous>, transform_indices = @transform_3, window_bounds = array<i64: 128, 128>}, {pipeline_mode = #tpu.pipeline_mode<synchronous>, transform_indices = @transform_4, window_bounds = array<i64: 1, 128>}, {transform_indices = @transform_5, window_bounds = array<i64: 1, 8, 16, 128>}]} {
    %c8_i32 = arith.constant 8 : i32
    %0 = arith.muli %arg1, %c8_i32 : i32
    %1 = tpu.assume_multiple %0, 8 : i32
    %c0 = arith.constant 0 : index
    %2 = arith.index_cast %1 : i32 to index
    %c0_0 = arith.constant 0 : index
    %c0_1 = arith.constant 0 : index
    %3 = vector.load %arg2[%c0, %2, %c0_0, %c0_1] : memref<1x16x16x128xbf16, #tpu.memory_space<vmem>>, vector<1x8x16x128xbf16>
    %4 = vector.shape_cast %3 : vector<1x8x16x128xbf16> to vector<8x16x128xbf16>
    %c1 = arith.constant 1 : index
    %c0_2 = arith.constant 0 : index
    %c128 = arith.constant 128 : index
    %5 = vector.load %arg8[%c1, %c0_2, %c128] : memref<10x16x384xbf16, #tpu.memory_space<vmem>>, vector<8x16x128xbf16>
    tpu.vector_store %arg8[%c1, %c0_2, %c128], %4 {strides = array<i32>} : memref<10x16x384xbf16, #tpu.memory_space<vmem>>, vector<8x16x128xbf16>,
    %6 = vector.extract_strided_slice %4 {offsets = [0, 0, 0], sizes = [8, 15, 128], strides = [1, 1, 1]} : vector<8x16x128xbf16> to vector<8x15x128xbf16>
    %c1_3 = arith.constant 1 : index
    %c1_4 = arith.constant 1 : index
    %c0_5 = arith.constant 0 : index
    %7 = vector.load %arg8[%c1_3, %c1_4, %c0_5] : memref<10x16x384xbf16, #tpu.memory_space<vmem>>, vector<8x15x128xbf16>
    tpu.vector_store %arg8[%c1_3, %c1_4, %c0_5], %6 {strides = array<i32>} : memref<10x16x384xbf16, #tpu.memory_space<vmem>>, vector<8x15x128xbf16>,
    %8 = vector.extract_strided_slice %4 {offsets = [0, 1, 0], sizes = [8, 15, 128], strides = [1, 1, 1]} : vector<8x16x128xbf16> to vector<8x15x128xbf16>
    %c1_6 = arith.constant 1 : index
    %c0_7 = arith.constant 0 : index
    %c256 = arith.constant 256 : index
    %9 = vector.load %arg8[%c1_6, %c0_7, %c256] : memref<10x16x384xbf16, #tpu.memory_space<vmem>>, vector<8x15x128xbf16>
    tpu.vector_store %arg8[%c1_6, %c0_7, %c256], %8 {strides = array<i32>} : memref<10x16x384xbf16, #tpu.memory_space<vmem>>, vector<8x15x128xbf16>,
    %c0_i32 = arith.constant 0 : i32
    %10 = arith.cmpi eq, %arg1, %c0_i32 : i32
    %11 = arith.extui %10 : i1 to i32
    %c0_i32_8 = arith.constant 0 : i32
    %12 = arith.cmpi ne, %11, %c0_i32_8 : i32
    scf.if %12 {
      %cst_65 = arith.constant 0.000000e+00 : bf16
      %68 = vector.broadcast %cst_65 : bf16 to vector<1x16x384xbf16>
      %c0_66 = arith.constant 0 : index
      %c0_67 = arith.constant 0 : index
      %c0_68 = arith.constant 0 : index
      %69 = vector.load %arg8[%c0_66, %c0_67, %c0_68] : memref<10x16x384xbf16, #tpu.memory_space<vmem>>, vector<1x16x384xbf16>
      tpu.vector_store %arg8[%c0_66, %c0_67, %c0_68], %68 {strides = array<i32>} : memref<10x16x384xbf16, #tpu.memory_space<vmem>>, vector<1x16x384xbf16>,
    } else {
    }
    %c0_i32_9 = arith.constant 0 : i32
    %13 = arith.cmpi sgt, %arg1, %c0_i32_9 : i32
    %14 = arith.extui %13 : i1 to i32
    %c0_i32_10 = arith.constant 0 : i32
    %15 = arith.cmpi ne, %14, %c0_i32_10 : i32
    scf.if %15 {
      %c1_i32_65 = arith.constant 1 : i32
      %68 = arith.subi %1, %c1_i32_65 : i32
      %c0_66 = arith.constant 0 : index
      %69 = arith.index_cast %68 : i32 to index
      %c0_67 = arith.constant 0 : index
      %c0_68 = arith.constant 0 : index
      %70 = vector.load %arg2[%c0_66, %69, %c0_67, %c0_68] : memref<1x16x16x128xbf16, #tpu.memory_space<vmem>>, vector<1x1x16x128xbf16>
      %71 = vector.shape_cast %70 : vector<1x1x16x128xbf16> to vector<1x16x128xbf16>
      %c0_69 = arith.constant 0 : index
      %c0_70 = arith.constant 0 : index
      %c128_71 = arith.constant 128 : index
      %72 = vector.load %arg8[%c0_69, %c0_70, %c128_71] : memref<10x16x384xbf16, #tpu.memory_space<vmem>>, vector<1x16x128xbf16>
      tpu.vector_store %arg8[%c0_69, %c0_70, %c128_71], %71 {strides = array<i32>} : memref<10x16x384xbf16, #tpu.memory_space<vmem>>, vector<1x16x128xbf16>,
      %73 = vector.extract_strided_slice %71 {offsets = [0, 0, 0], sizes = [1, 15, 128], strides = [1, 1, 1]} : vector<1x16x128xbf16> to vector<1x15x128xbf16>
      %c0_72 = arith.constant 0 : index
      %c1_73 = arith.constant 1 : index
      %c0_74 = arith.constant 0 : index
      %74 = vector.load %arg8[%c0_72, %c1_73, %c0_74] : memref<10x16x384xbf16, #tpu.memory_space<vmem>>, vector<1x15x128xbf16>
      tpu.vector_store %arg8[%c0_72, %c1_73, %c0_74], %73 {strides = array<i32>} : memref<10x16x384xbf16, #tpu.memory_space<vmem>>, vector<1x15x128xbf16>,
      %75 = vector.extract_strided_slice %71 {offsets = [0, 1, 0], sizes = [1, 15, 128], strides = [1, 1, 1]} : vector<1x16x128xbf16> to vector<1x15x128xbf16>
      %c0_75 = arith.constant 0 : index
      %c0_76 = arith.constant 0 : index
      %c256_77 = arith.constant 256 : index
      %76 = vector.load %arg8[%c0_75, %c0_76, %c256_77] : memref<10x16x384xbf16, #tpu.memory_space<vmem>>, vector<1x15x128xbf16>
      tpu.vector_store %arg8[%c0_75, %c0_76, %c256_77], %75 {strides = array<i32>} : memref<10x16x384xbf16, #tpu.memory_space<vmem>>, vector<1x15x128xbf16>,
    } else {
    }
    %c1_i32 = arith.constant 1 : i32
    %16 = arith.cmpi eq, %arg1, %c1_i32 : i32
    %17 = arith.extui %16 : i1 to i32
    %c0_i32_11 = arith.constant 0 : i32
    %18 = arith.cmpi ne, %17, %c0_i32_11 : i32
    scf.if %18 {
      %cst_65 = arith.constant 0.000000e+00 : bf16
      %68 = vector.broadcast %cst_65 : bf16 to vector<1x16x384xbf16>
      %c9 = arith.constant 9 : index
      %c0_66 = arith.constant 0 : index
      %c0_67 = arith.constant 0 : index
      %69 = vector.load %arg8[%c9, %c0_66, %c0_67] : memref<10x16x384xbf16, #tpu.memory_space<vmem>>, vector<1x16x384xbf16>
      tpu.vector_store %arg8[%c9, %c0_66, %c0_67], %68 {strides = array<i32>} : memref<10x16x384xbf16, #tpu.memory_space<vmem>>, vector<1x16x384xbf16>,
    } else {
    }
    %c1_i32_12 = arith.constant 1 : i32
    %19 = arith.cmpi slt, %arg1, %c1_i32_12 : i32
    %20 = arith.extui %19 : i1 to i32
    %c0_i32_13 = arith.constant 0 : i32
    %21 = arith.cmpi ne, %20, %c0_i32_13 : i32
    scf.if %21 {
      %c8_i32_65 = arith.constant 8 : i32
      %68 = arith.addi %1, %c8_i32_65 : i32
      %c0_66 = arith.constant 0 : index
      %69 = arith.index_cast %68 : i32 to index
      %c0_67 = arith.constant 0 : index
      %c0_68 = arith.constant 0 : index
      %70 = vector.load %arg2[%c0_66, %69, %c0_67, %c0_68] : memref<1x16x16x128xbf16, #tpu.memory_space<vmem>>, vector<1x1x16x128xbf16>
      %71 = vector.shape_cast %70 : vector<1x1x16x128xbf16> to vector<1x16x128xbf16>
      %c9 = arith.constant 9 : index
      %c0_69 = arith.constant 0 : index
      %c128_70 = arith.constant 128 : index
      %72 = vector.load %arg8[%c9, %c0_69, %c128_70] : memref<10x16x384xbf16, #tpu.memory_space<vmem>>, vector<1x16x128xbf16>
      tpu.vector_store %arg8[%c9, %c0_69, %c128_70], %71 {strides = array<i32>} : memref<10x16x384xbf16, #tpu.memory_space<vmem>>, vector<1x16x128xbf16>,
      %73 = vector.extract_strided_slice %71 {offsets = [0, 0, 0], sizes = [1, 15, 128], strides = [1, 1, 1]} : vector<1x16x128xbf16> to vector<1x15x128xbf16>
      %c9_71 = arith.constant 9 : index
      %c1_72 = arith.constant 1 : index
      %c0_73 = arith.constant 0 : index
      %74 = vector.load %arg8[%c9_71, %c1_72, %c0_73] : memref<10x16x384xbf16, #tpu.memory_space<vmem>>, vector<1x15x128xbf16>
      tpu.vector_store %arg8[%c9_71, %c1_72, %c0_73], %73 {strides = array<i32>} : memref<10x16x384xbf16, #tpu.memory_space<vmem>>, vector<1x15x128xbf16>,
      %75 = vector.extract_strided_slice %71 {offsets = [0, 1, 0], sizes = [1, 15, 128], strides = [1, 1, 1]} : vector<1x16x128xbf16> to vector<1x15x128xbf16>
      %c9_74 = arith.constant 9 : index
      %c0_75 = arith.constant 0 : index
      %c256_76 = arith.constant 256 : index
      %76 = vector.load %arg8[%c9_74, %c0_75, %c256_76] : memref<10x16x384xbf16, #tpu.memory_space<vmem>>, vector<1x15x128xbf16>
      tpu.vector_store %arg8[%c9_74, %c0_75, %c256_76], %75 {strides = array<i32>} : memref<10x16x384xbf16, #tpu.memory_space<vmem>>, vector<1x15x128xbf16>,
    } else {
    }
    %cst = arith.constant 0.000000e+00 : bf16
    %22 = vector.broadcast %cst : bf16 to vector<10x1x128xbf16>
    %c0_14 = arith.constant 0 : index
    %c0_15 = arith.constant 0 : index
    %c0_16 = arith.constant 0 : index
    %23 = vector.load %arg8[%c0_14, %c0_15, %c0_16] : memref<10x16x384xbf16, #tpu.memory_space<vmem>>, vector<10x1x128xbf16>
    tpu.vector_store %arg8[%c0_14, %c0_15, %c0_16], %22 {strides = array<i32>} : memref<10x16x384xbf16, #tpu.memory_space<vmem>>, vector<10x1x128xbf16>,
    %cst_17 = arith.constant 0.000000e+00 : bf16
    %24 = vector.broadcast %cst_17 : bf16 to vector<10x1x128xbf16>
    %c0_18 = arith.constant 0 : index
    %c15 = arith.constant 15 : index
    %c256_19 = arith.constant 256 : index
    %25 = vector.load %arg8[%c0_18, %c15, %c256_19] : memref<10x16x384xbf16, #tpu.memory_space<vmem>>, vector<10x1x128xbf16>
    tpu.vector_store %arg8[%c0_18, %c15, %c256_19], %24 {strides = array<i32>} : memref<10x16x384xbf16, #tpu.memory_space<vmem>>, vector<10x1x128xbf16>,
    %c0_20 = arith.constant 0 : index
    %c0_21 = arith.constant 0 : index
    %c0_22 = arith.constant 0 : index
    %26 = vector.load %arg8[%c0_20, %c0_21, %c0_22] : memref<10x16x384xbf16, #tpu.memory_space<vmem>>, vector<8x16x384xbf16>
    %27 = vector.shape_cast %26 : vector<8x16x384xbf16> to vector<128x384xbf16>
    %c0_23 = arith.constant 0 : index
    %c0_24 = arith.constant 0 : index
    %c0_25 = arith.constant 0 : index
    %28 = vector.load %arg3[%c0_23, %c0_24, %c0_25] : memref<3x384x128xbf16, #tpu.memory_space<vmem>>, vector<1x384x128xbf16>
    %29 = vector.shape_cast %28 : vector<1x384x128xbf16> to vector<384x128xbf16>
    %cst_26 = arith.constant dense<0.000000e+00> : vector<128x128xf32>
    %30 = tpu.matmul %27, %29, %cst_26 {dimension_numbers = #tpu.dot_dimension_numbers<[1], [0], [0], [1], [0, 0, 1, 1], [], []>} : vector<128x384xbf16>, vector<384x128xbf16>, vector<128x128xf32> -> vector<128x128xf32>
    %c0_27 = arith.constant 0 : index
    %c0_28 = arith.constant 0 : index
    %31 = vector.load %arg9[%c0_27, %c0_28] : memref<128x128xf32, #tpu.memory_space<vmem>>, vector<128x128xf32>
    tpu.vector_store %arg9[%c0_27, %c0_28], %30 {strides = array<i32>} : memref<128x128xf32, #tpu.memory_space<vmem>>, vector<128x128xf32>,
    %c1_29 = arith.constant 1 : index
    %c0_30 = arith.constant 0 : index
    %c0_31 = arith.constant 0 : index
    %32 = vector.load %arg8[%c1_29, %c0_30, %c0_31] : memref<10x16x384xbf16, #tpu.memory_space<vmem>>, vector<8x16x384xbf16>
    %33 = vector.shape_cast %32 : vector<8x16x384xbf16> to vector<128x384xbf16>
    %c0_32 = arith.constant 0 : index
    %c0_33 = arith.constant 0 : index
    %34 = vector.load %arg9[%c0_32, %c0_33] : memref<128x128xf32, #tpu.memory_space<vmem>>, vector<128x128xf32>
    %c1_34 = arith.constant 1 : index
    %c0_35 = arith.constant 0 : index
    %c0_36 = arith.constant 0 : index
    %35 = vector.load %arg3[%c1_34, %c0_35, %c0_36] : memref<3x384x128xbf16, #tpu.memory_space<vmem>>, vector<1x384x128xbf16>
    %36 = vector.shape_cast %35 : vector<1x384x128xbf16> to vector<384x128xbf16>
    %cst_37 = arith.constant dense<0.000000e+00> : vector<128x128xf32>
    %37 = tpu.matmul %33, %36, %cst_37 {dimension_numbers = #tpu.dot_dimension_numbers<[1], [0], [0], [1], [0, 0, 1, 1], [], []>} : vector<128x384xbf16>, vector<384x128xbf16>, vector<128x128xf32> -> vector<128x128xf32>
    %38 = arith.addf %34, %37 : vector<128x128xf32>
    %c0_38 = arith.constant 0 : index
    %c0_39 = arith.constant 0 : index
    %39 = vector.load %arg9[%c0_38, %c0_39] : memref<128x128xf32, #tpu.memory_space<vmem>>, vector<128x128xf32>
    tpu.vector_store %arg9[%c0_38, %c0_39], %38 {strides = array<i32>} : memref<128x128xf32, #tpu.memory_space<vmem>>, vector<128x128xf32>,
    %c2 = arith.constant 2 : index
    %c0_40 = arith.constant 0 : index
    %c0_41 = arith.constant 0 : index
    %40 = vector.load %arg8[%c2, %c0_40, %c0_41] : memref<10x16x384xbf16, #tpu.memory_space<vmem>>, vector<8x16x384xbf16>
    %41 = vector.shape_cast %40 : vector<8x16x384xbf16> to vector<128x384xbf16>
    %c0_42 = arith.constant 0 : index
    %c0_43 = arith.constant 0 : index
    %42 = vector.load %arg9[%c0_42, %c0_43] : memref<128x128xf32, #tpu.memory_space<vmem>>, vector<128x128xf32>
    %c2_44 = arith.constant 2 : index
    %c0_45 = arith.constant 0 : index
    %c0_46 = arith.constant 0 : index
    %43 = vector.load %arg3[%c2_44, %c0_45, %c0_46] : memref<3x384x128xbf16, #tpu.memory_space<vmem>>, vector<1x384x128xbf16>
    %44 = vector.shape_cast %43 : vector<1x384x128xbf16> to vector<384x128xbf16>
    %cst_47 = arith.constant dense<0.000000e+00> : vector<128x128xf32>
    %45 = tpu.matmul %41, %44, %cst_47 {dimension_numbers = #tpu.dot_dimension_numbers<[1], [0], [0], [1], [0, 0, 1, 1], [], []>} : vector<128x384xbf16>, vector<384x128xbf16>, vector<128x128xf32> -> vector<128x128xf32>
    %46 = arith.addf %42, %45 : vector<128x128xf32>
    %c0_48 = arith.constant 0 : index
    %c0_49 = arith.constant 0 : index
    %47 = vector.load %arg9[%c0_48, %c0_49] : memref<128x128xf32, #tpu.memory_space<vmem>>, vector<128x128xf32>
    tpu.vector_store %arg9[%c0_48, %c0_49], %46 {strides = array<i32>} : memref<128x128xf32, #tpu.memory_space<vmem>>, vector<128x128xf32>,
    %c0_50 = arith.constant 0 : index
    %c0_51 = arith.constant 0 : index
    %48 = vector.load %arg9[%c0_50, %c0_51] : memref<128x128xf32, #tpu.memory_space<vmem>>, vector<128x128xf32>
    %c0_52 = arith.constant 0 : index
    %c0_53 = arith.constant 0 : index
    %49 = vector.load %arg4[%c0_52, %c0_53] : memref<1x128xf32, #tpu.memory_space<vmem>>, vector<1x128xf32>
    %50 = vector.broadcast %49 : vector<1x128xf32> to vector<128x128xf32>
    %51 = arith.addf %48, %50 : vector<128x128xf32>
    %cst_54 = arith.constant 0.000000e+00 : f32
    %52 = vector.broadcast %cst_54 : f32 to vector<128x128xf32>
    %53 = arith.cmpf ogt, %51, %52 : vector<128x128xf32>
    %cst_55 = arith.constant 1.000000e-01 : f32
    %54 = vector.broadcast %cst_55 : f32 to vector<128x128xf32>
    %55 = arith.mulf %54, %51 : vector<128x128xf32>
    %56 = arith.select %53, %51, %55 : vector<128x128xi1>, vector<128x128xf32>
    %57 = arith.truncf %56 : vector<128x128xf32> to vector<128x128xbf16>
    %c0_56 = arith.constant 0 : index
    %c0_57 = arith.constant 0 : index
    %58 = vector.load %arg5[%c0_56, %c0_57] : memref<128x128xbf16, #tpu.memory_space<vmem>>, vector<128x128xbf16>
    %cst_58 = arith.constant dense<0.000000e+00> : vector<128x128xf32>
    %59 = tpu.matmul %57, %58, %cst_58 {dimension_numbers = #tpu.dot_dimension_numbers<[1], [0], [0], [1], [0, 0, 1, 1], [], []>} : vector<128x128xbf16>, vector<128x128xbf16>, vector<128x128xf32> -> vector<128x128xf32>
    %c0_59 = arith.constant 0 : index
    %c0_60 = arith.constant 0 : index
    %60 = vector.load %arg6[%c0_59, %c0_60] : memref<1x128xf32, #tpu.memory_space<vmem>>, vector<1x128xf32>
    %61 = vector.broadcast %60 : vector<1x128xf32> to vector<128x128xf32>
    %62 = arith.addf %59, %61 : vector<128x128xf32>
    %63 = vector.shape_cast %62 : vector<128x128xf32> to vector<8x16x128xf32>
    %64 = arith.truncf %63 : vector<8x16x128xf32> to vector<8x16x128xbf16>
    %c0_61 = arith.constant 0 : index
    %c0_62 = arith.constant 0 : index
    %c0_63 = arith.constant 0 : index
    %c0_64 = arith.constant 0 : index
    %65 = vector.load %arg7[%c0_61, %c0_62, %c0_63, %c0_64] : memref<1x8x16x128xbf16, #tpu.memory_space<vmem>>, vector<1x8x16x128xbf16>
    %66 = vector.shape_cast %65 : vector<1x8x16x128xbf16> to vector<8x16x128xbf16>
    %67 = vector.shape_cast %64 : vector<8x16x128xbf16> to vector<1x8x16x128xbf16>
    tpu.vector_store %arg7[%c0_61, %c0_62, %c0_63, %c0_64], %67 {strides = array<i32>} : memref<1x8x16x128xbf16, #tpu.memory_space<vmem>>, vector<1x8x16x128xbf16>,
    return
  }
  func.func @transform_0(%arg0: i32, %arg1: i32) -> (i32, i32, i32, i32) {
    %c0_i32 = arith.constant 0 : i32
    %c0_i32_0 = arith.constant 0 : i32
    %c0_i32_1 = arith.constant 0 : i32
    %c0_i32_2 = arith.constant 0 : i32
    return %arg0, %c0_i32, %c0_i32_0, %c0_i32_1 : i32, i32, i32, i32
  }
  func.func @transform_1(%arg0: i32, %arg1: i32) -> (i32, i32, i32) {
    %c0_i32 = arith.constant 0 : i32
    %c0_i32_0 = arith.constant 0 : i32
    %c0_i32_1 = arith.constant 0 : i32
    %c0_i32_2 = arith.constant 0 : i32
    return %c0_i32, %c0_i32_0, %c0_i32_1 : i32, i32, i32
  }
  func.func @transform_2(%arg0: i32, %arg1: i32) -> (i32, i32) {
    %c0_i32 = arith.constant 0 : i32
    %c0_i32_0 = arith.constant 0 : i32
    %c0_i32_1 = arith.constant 0 : i32
    return %c0_i32, %c0_i32_0 : i32, i32
  }
  func.func @transform_3(%arg0: i32, %arg1: i32) -> (i32, i32) {
    %c0_i32 = arith.constant 0 : i32
    %c0_i32_0 = arith.constant 0 : i32
    %c0_i32_1 = arith.constant 0 : i32
    return %c0_i32, %c0_i32_0 : i32, i32
  }
  func.func @transform_4(%arg0: i32, %arg1: i32) -> (i32, i32) {
    %c0_i32 = arith.constant 0 : i32
    %c0_i32_0 = arith.constant 0 : i32
    %c0_i32_1 = arith.constant 0 : i32
    return %c0_i32, %c0_i32_0 : i32, i32
  }
  func.func @transform_5(%arg0: i32, %arg1: i32) -> (i32, i32, i32, i32) {
    %c0_i32 = arith.constant 0 : i32
    %c0_i32_0 = arith.constant 0 : i32
    %c0_i32_1 = arith.constant 0 : i32
    return %arg0, %arg1, %c0_i32, %c0_i32_0 : i32, i32, i32, i32
  }
}

</mosaic_0001>

<llo_original>
// kernel: tpu_custom_call.1
$region0: #{tpu_custom_call.1}
  #allocation0 [shape = 'u32[]', space=smem, size = 0x4, offset = 0x4, fixed_abs, tag = 'smem constant byte address 0x4 - core index']
  #allocation1 [shape = 'u32[144,128]{1,0:T(1,128)}', space=vmem, size = 0x12000, scoped, tag = 'internal scratch']
  #allocation2 [shape = 'bf16[10,16,384]{2,1,0:T(16,128)(2,1)}', space=vmem, size = 0x1e000, scoped, tag = 'scratch operand']
  #allocation3 [shape = 'f32[128,128]{1,0:T(8,128)}', space=vmem, size = 0x10000, scoped, tag = 'scratch operand']
  %s0 = inlined_call_operand.hbm [shape: bf16[2,16,16,128], index: 0, kind: input, shape index: {}]
  %s1 = inlined_call_operand.hbm [shape: bf16[3,384,128], index: 1, kind: input, shape index: {}]
  %s2 = inlined_call_operand.vmem [shape: f32[1,128], index: 2, kind: input, shape index: {}]
  %s3 = inlined_call_operand.hbm [shape: bf16[128,128], index: 3, kind: input, shape index: {}]
  %s4 = inlined_call_operand.vmem [shape: f32[1,128], index: 4, kind: input, shape index: {}]
  %s5 = inlined_call_operand.hbm [shape: bf16[2,16,16,128], index: 5, kind: output, shape index: {}]
  %s6 = sld [smem:[#allocation0]]
  $region81: #{tpu_custom_call.1} parent=0
    _
  %s8 = ssub.s32 1, %s6
  %s9 = scalar_select 0, %s8, %s6
  $region1: #{tpu_custom_call.1} parent=0
    #allocation4 [shape = 'u8[131072]{0}', space=vmem, size = 0x20000, scoped, tag = 'input window, operand 0']
    #allocation5 [shape = 's32[2]{0}', space=sflag, size = 0x8, scoped, tag = 'scoped memory for tpu_custom_call.1']
    #allocation6 [shape = 's32[2]{0}', space=sflag, size = 0x8, scoped, tag = 'scoped memory for tpu_custom_call.1']
    #allocation7 [shape = 'u8[294912]{0}', space=vmem, size = 0x48000, scoped, tag = 'input window, operand 1, single buffered']
    #allocation8 [shape = 's32[1]{0}', space=sflag, size = 0x4, scoped, tag = 'scoped memory for tpu_custom_call.1']
    #allocation9 [shape = 'u8[32768]{0}', space=vmem, size = 0x8000, scoped, tag = 'input window, operand 3, single buffered']
    #allocation10 [shape = 'u8[65536]{0}', space=vmem, size = 0x10000, scoped, tag = 'output window, operand 0']
    %10 = vsyncpa [#allocation5], 0
    %s11 = scalar_lea.sflag [#allocation5], 1
    %12 = vsyncpa %s11, 0
    %13 = vsyncpa [#allocation8], 0
    %14 = vsyncpa [#allocation6], 0
    %s15 = scalar_lea.sflag [#allocation6], 1
    %16 = vsyncpa %s15, 0
    loop: start=0, step=1, limit=6
    $region2: #{tpu_custom_call.1} parent=1 // loop_pre_header
      _
    $region3: #{tpu_custom_call.1} parent=1 // loop_header
      %s18 = sphi 0, %s22
      %p19 = scmp.ge.s32.totalorder %s18, 6
      %s25 = sphi 0, %s37
      %s26 = sphi 0, %s33
      %s27 = sphi 0, %s25
      %s28 = sphi 0, %s26
      %s29 = sphi 0, %s27
      %s30 = sphi 0, %s28
      %s40 = sphi 0, %s42
      %s43 = sphi 0, %s40
      %s44 = sphi 0, %s43
      %s60 = sphi 0, %s44
      %s64 = sphi 0, %s64
      %s66 = sphi 0, %s64
      %s67 = sphi 0, %s66
      %s81 = sphi 0, %s67
      %s85 = sphi 0, %s85
      %s87 = sphi 0, %s85
      %s88 = sphi 0, %s87
      %s102 = sphi 0, %s88
      %s106 = sphi 0, %s106
      %s108 = sphi 0, %s106
      %s109 = sphi 0, %s108
      %s123 = sphi 0, %s109
      %s127 = sphi 0, %s127
      %s129 = sphi 0, %s127
      %s130 = sphi 0, %s129
      %s144 = sphi 0, %s130
      %s152 = sphi 0, %s154
      %s155 = sphi 0, %s152
      %s156 = sphi 0, %s155
      %s172 = sphi 0, %s156
    $region4: #{tpu_custom_call.1} parent=1 // loop_header_branch
      %21 = sbr.rel (%p19) target = $region8
    $region5: #{tpu_custom_call.1} parent=1 // loop_body
      %s23 = ssub.s32 %s18, 1
      %s24 = ssub.s32 %s18, 2
      %s31 = sadd.s32 1, %s26
      %p32 = scmp.ge.s32.totalorder %s31, 2
      %s33 = scalar_select %p32, 0, %s31
      %s34 = sadd.s32 1, %s25
      %s35 = scalar_select %p32, %s34, %s25
      %p36 = scmp.ge.s32.totalorder %s35, 2
      %s37 = scalar_select %p36, 0, %s35
      %s38 = ssub.s32 %s25, %s37
      %p39 = scmp.eq.s32.totalorder %s38, 0
      %s41 = sadd.s32 %s40, 1
      %s42 = scalar_select %p39, %s40, %s41
      %p45 = pneg %p39
      %p46 = scmp.eq.s32.totalorder %s18, 3
      %p47 = por %p45, %p46
      %p48 = scmp.ne.s32.totalorder %s40, %s43
      %p49 = scmp.eq.s32.totalorder %s18, 0
      %p50 = por %p48, %p49
      %p51 = scmp.ne.s32.totalorder %s40, %s43
      %p52 = scmp.eq.s32.totalorder %s23, 3
      %p53 = por %p51, %p52
      %p54 = scmp.ne.s32.totalorder %s43, %s44
      %p55 = scmp.eq.s32.totalorder %s23, 0
      %p56 = por %p54, %p55
      %p57 = scmp.ne.s32.totalorder %s43, %s44
      %p58 = scmp.eq.s32.totalorder %s24, 3
      %p59 = por %p57, %p58
      %p61 = scmp.ne.s32.totalorder %s44, %s60
      %p62 = scmp.eq.s32.totalorder %s24, 0
      %p63 = por %p61, %p62
      %s65 = sadd.s32 %s64, 1
      %p68 = scmp.eq.s32.totalorder %s18, 3
      %p69 = scmp.ne.s32.totalorder %s64, %s66
      %p70 = scmp.eq.s32.totalorder %s18, 0
      %p71 = por %p69, %p70
      %p72 = scmp.ne.s32.totalorder %s64, %s66
      %p73 = scmp.eq.s32.totalorder %s23, 3
      %p74 = por %p72, %p73
      %p75 = scmp.ne.s32.totalorder %s66, %s67
      %p76 = scmp.eq.s32.totalorder %s23, 0
      %p77 = por %p75, %p76
      %p78 = scmp.ne.s32.totalorder %s66, %s67
      %p79 = scmp.eq.s32.totalorder %s24, 3
      %p80 = por %p78, %p79
      %p82 = scmp.ne.s32.totalorder %s67, %s81
      %p83 = scmp.eq.s32.totalorder %s24, 0
      %p84 = por %p82, %p83
      %s86 = sadd.s32 %s85, 1
      %p89 = scmp.eq.s32.totalorder %s18, 3
      %p90 = scmp.ne.s32.totalorder %s85, %s87
      %p91 = scmp.eq.s32.totalorder %s18, 0
      %p92 = por %p90, %p91
      %p93 = scmp.ne.s32.totalorder %s85, %s87
      %p94 = scmp.eq.s32.totalorder %s23, 3
      %p95 = por %p93, %p94
      %p96 = scmp.ne.s32.totalorder %s87, %s88
      %p97 = scmp.eq.s32.totalorder %s23, 0
      %p98 = por %p96, %p97
      %p99 = scmp.ne.s32.totalorder %s87, %s88
      %p100 = scmp.eq.s32.totalorder %s24, 3
      %p101 = por %p99, %p100
      %p103 = scmp.ne.s32.totalorder %s88, %s102
      %p104 = scmp.eq.s32.totalorder %s24, 0
      %p105 = por %p103, %p104
      %s107 = sadd.s32 %s106, 1
      %p110 = scmp.eq.s32.totalorder %s18, 3
      %p111 = scmp.ne.s32.totalorder %s106, %s108
      %p112 = scmp.eq.s32.totalorder %s18, 0
      %p113 = por %p111, %p112
      %p114 = scmp.ne.s32.totalorder %s106, %s108
      %p115 = scmp.eq.s32.totalorder %s23, 3
      %p116 = por %p114, %p115
      %p117 = scmp.ne.s32.totalorder %s108, %s109
      %p118 = scmp.eq.s32.totalorder %s23, 0
      %p119 = por %p117, %p118
      %p120 = scmp.ne.s32.totalorder %s108, %s109
      %p121 = scmp.eq.s32.totalorder %s24, 3
      %p122 = por %p120, %p121
      %p124 = scmp.ne.s32.totalorder %s109, %s123
      %p125 = scmp.eq.s32.totalorder %s24, 0
      %p126 = por %p124, %p125
      %s128 = sadd.s32 %s127, 1
      %p131 = scmp.eq.s32.totalorder %s18, 3
      %p132 = scmp.ne.s32.totalorder %s127, %s129
      %p133 = scmp.eq.s32.totalorder %s18, 0
      %p134 = por %p132, %p133
      %p135 = scmp.ne.s32.totalorder %s127, %s129
      %p136 = scmp.eq.s32.totalorder %s23, 3
      %p137 = por %p135, %p136
      %p138 = scmp.ne.s32.totalorder %s129, %s130
      %p139 = scmp.eq.s32.totalorder %s23, 0
      %p140 = por %p138, %p139
      %p141 = scmp.ne.s32.totalorder %s129, %s130
      %p142 = scmp.eq.s32.totalorder %s24, 3
      %p143 = por %p141, %p142
      %p145 = scmp.ne.s32.totalorder %s130, %s144
      %p146 = scmp.eq.s32.totalorder %s24, 0
      %p147 = por %p145, %p146
      %s148 = ssub.s32 %s25, %s37
      %s149 = ssub.s32 %s26, %s33
      %s150 = sor.u32 %s148, %s149
      %p151 = scmp.eq.s32.totalorder %s150, 0
      %s153 = sadd.s32 %s152, 1
      %s154 = scalar_select %p151, %s152, %s153
      %p157 = pneg %p151
      %p158 = scmp.eq.s32.totalorder %s18, 3
      %p159 = por %p157, %p158
      %p160 = scmp.ne.s32.totalorder %s152, %s155
      %p161 = scmp.eq.s32.totalorder %s18, 0
      %p162 = por %p160, %p161
      %p163 = scmp.ne.s32.totalorder %s152, %s155
      %p164 = scmp.eq.s32.totalorder %s23, 3
      %p165 = por %p163, %p164
      %p166 = scmp.ne.s32.totalorder %s155, %s156
      %p167 = scmp.eq.s32.totalorder %s23, 0
      %p168 = por %p166, %p167
      %p169 = scmp.ne.s32.totalorder %s155, %s156
      %p170 = scmp.eq.s32.totalorder %s24, 3
      %p171 = por %p169, %p170
      %p173 = scmp.ne.s32.totalorder %s156, %s172
      %p174 = scmp.eq.s32.totalorder %s24, 0
      %p175 = por %p173, %p174
      %p176 = scmp.le.s32.totalorder 1, %s18
      %p177 = scmp.lt.s32.totalorder %s18, 5
      %p178 = pnand %p176, %p177
      %p179 = pneg %p178
      // Predicated region
      $region9: #{tpu_custom_call.1} parent=5 // pred_check
        _
      $region10: #{tpu_custom_call.1} parent=5 // pred_check_branch
        %181 = sbr.rel (%p178) target = $region12
      $region11: #{tpu_custom_call.1} parent=5 // pred_region
        %s182 = ssub.s32 %s18, 1
        // Predicated region
        $region13: #{tpu_custom_call.1} parent=11 // pred_check
          %p183 = pneg %p77
        $region14: #{tpu_custom_call.1} parent=11 // pred_check_branch
          %185 = sbr.rel (%p183) target = $region16
        $region15: #{tpu_custom_call.1} parent=11 // pred_region
          %s187 = ssub.s32 9216, 9216
          %188 = vsyncadd [#allocation8], %s187
          %s189 = sshll.u32 [#allocation7], 4
          %s190 = int_to_ptr.vmem [resolvable:$true] %s189
          %195 = dma.hbm_to_vmem [thread:$0]  %s1, 9216, %s190, [#allocation8], 64, 64, 4
        $region16: #{tpu_custom_call.1} parent=11 // pred_fallthru
          _
        // Predicated region
        $region17: #{tpu_custom_call.1} parent=11 // pred_check
          %p196 = pneg %p98
        $region18: #{tpu_custom_call.1} parent=11 // pred_check_branch
          %198 = sbr.rel (%p196) target = $region20
        $region19: #{tpu_custom_call.1} parent=11 // pred_region
          _
        $region20: #{tpu_custom_call.1} parent=11 // pred_fallthru
          _
        // Predicated region
        $region21: #{tpu_custom_call.1} parent=11 // pred_check
          %p199 = pneg %p119
        $region22: #{tpu_custom_call.1} parent=11 // pred_check_branch
          %201 = sbr.rel (%p199) target = $region24
        $region23: #{tpu_custom_call.1} parent=11 // pred_region
          %s203 = ssub.s32 1024, 1024
          %204 = vsyncadd [#allocation8], %s203
          %s205 = sshll.u32 [#allocation9], 4
          %s206 = int_to_ptr.vmem [resolvable:$true] %s205
          %211 = dma.hbm_to_vmem [thread:$0]  %s3, 1024, %s206, [#allocation8], 64, 64, 4
        $region24: #{tpu_custom_call.1} parent=11 // pred_fallthru
          _
        // Predicated region
        $region25: #{tpu_custom_call.1} parent=11 // pred_check
          %p212 = pneg %p140
        $region26: #{tpu_custom_call.1} parent=11 // pred_check_branch
          %214 = sbr.rel (%p212) target = $region28
        $region27: #{tpu_custom_call.1} parent=11 // pred_region
          _
        $region28: #{tpu_custom_call.1} parent=11 // pred_fallthru
          _
      $region12: #{tpu_custom_call.1} parent=5 // pred_fallthru
        _
      %p215 = scmp.lt.s32.totalorder %s18, 4
      // Predicated region
      $region29: #{tpu_custom_call.1} parent=5 // pred_check
        %p216 = pneg %p215
      $region30: #{tpu_custom_call.1} parent=5 // pred_check_branch
        %218 = sbr.rel (%p216) target = $region32
      $region31: #{tpu_custom_call.1} parent=5 // pred_region
        // Predicated region
        $region33: #{tpu_custom_call.1} parent=31 // pred_check
          %p219 = pneg %p50
        $region34: #{tpu_custom_call.1} parent=31 // pred_check_branch
          %221 = sbr.rel (%p219) target = $region36
        $region35: #{tpu_custom_call.1} parent=31 // pred_region
          %s222 = sand.u32 %s40, 1
          %s223 = scalar_lea.sflag [#allocation5], %s222
          %s224 = sand.u32 %s40, 1
          %s225 = smul.addr %s224, 128
          %s226 = scalar_lea.vmem [#allocation4], %s225
          %s228 = ssub.s32 2048, 2048
          %229 = vsyncadd %s223, %s228
          %s230 = smul.addr %s25, 32
          %s231 = smul.addr %s230, 64
          %s232 = scalar_lea.hbm %s0, %s231
          %s233 = sshll.u32 %s226, 4
          %s234 = int_to_ptr.vmem [resolvable:$true] %s233
          %239 = dma.hbm_to_vmem [thread:$0]  %s232, 2048, %s234, %s223, 64, 64, 4
        $region36: #{tpu_custom_call.1} parent=31 // pred_fallthru
          _
      $region32: #{tpu_custom_call.1} parent=5 // pred_fallthru
        _
      %p240 = scmp.le.s32.totalorder 1, %s18
      %p241 = scmp.lt.s32.totalorder %s18, 5
      %p242 = pnand %p240, %p241
      %p243 = pneg %p242
      // Predicated region
      $region37: #{tpu_custom_call.1} parent=5 // pred_check
        _
      $region38: #{tpu_custom_call.1} parent=5 // pred_check_branch
        %245 = sbr.rel (%p242) target = $region40
      $region39: #{tpu_custom_call.1} parent=5 // pred_region
        %s246 = ssub.s32 %s18, 1
        %s247 = sand.u32 %s43, 1
        %s248 = scalar_lea.sflag [#allocation5], %s247
        %s249 = sand.u32 %s43, 1
        %s250 = smul.addr %s249, 128
        %s251 = scalar_lea.vmem [#allocation4], %s250
        // Predicated region
        $region41: #{tpu_custom_call.1} parent=39 // pred_check
          %p252 = pneg %p56
        $region42: #{tpu_custom_call.1} parent=39 // pred_check_branch
          %254 = sbr.rel (%p252) target = $region44
        $region43: #{tpu_custom_call.1} parent=39 // pred_region
          %255 = dma.done %s248, 2048
        $region44: #{tpu_custom_call.1} parent=39 // pred_fallthru
          _
        // Predicated region
        $region45: #{tpu_custom_call.1} parent=39 // pred_check
          %p256 = pneg %p77
        $region46: #{tpu_custom_call.1} parent=39 // pred_check_branch
          %258 = sbr.rel (%p256) target = $region48
        $region47: #{tpu_custom_call.1} parent=39 // pred_region
          %259 = dma.done [#allocation8], 9216
        $region48: #{tpu_custom_call.1} parent=39 // pred_fallthru
          _
        // Predicated region
        $region49: #{tpu_custom_call.1} parent=39 // pred_check
          %p260 = pneg %p119
        $region50: #{tpu_custom_call.1} parent=39 // pred_check_branch
          %262 = sbr.rel (%p260) target = $region52
        $region51: #{tpu_custom_call.1} parent=39 // pred_region
          %263 = dma.done [#allocation8], 1024
        $region52: #{tpu_custom_call.1} parent=39 // pred_fallthru
          _
        %s264 = sand.u32 %s43, 1
        %s265 = scalar_lea.sflag [#allocation5], %s264
        %s266 = sand.u32 %s43, 1
        %s267 = smul.addr %s266, 128
        %s268 = scalar_lea.vmem [#allocation4], %s267
        %p269 = pneg %p56
        %p270 = pneg %p53
        %p271 = pneg %p77
        %p272 = pneg %p74
        %p273 = pneg %p98
        %p274 = pneg %p95
        %p275 = pneg %p119
        %p276 = pneg %p116
        %p277 = pneg %p140
        %p278 = pneg %p137
        %p279 = pneg %p168
        %p280 = pneg %p165
        %s281 = sand.u32 %s155, 1
        %s282 = scalar_lea.sflag [#allocation6], %s281
        %s283 = sand.u32 %s155, 1
        %s284 = smul.addr %s283, 64
        %s285 = scalar_lea.vmem [#allocation10], %s284
        %s286 = smul.u32 8, %s28
        %s288 = smul.u32 %s28, 8
        %s289 = smul.u32 %s288, 2
        %s290 = smul.addr %s289, 4
        %s291 = scalar_lea.vmem %s251, %s290 [#allocation4]
        %v292 = vld [vmem:[%s291] sm:$0xf]
        %v293 = vld [vmem:[%s291 + $0x4] sm:$0xf]
        %v294 = vld [vmem:[%s291 + $0x8] sm:$0xf]
        %v295 = vld [vmem:[%s291 + $0xc] sm:$0xf]
        %v296 = vld [vmem:[%s291 + $0x10] sm:$0xf]
        %v297 = vld [vmem:[%s291 + $0x14] sm:$0xf]
        %v298 = vld [vmem:[%s291 + $0x18] sm:$0xf]
        %v299 = vld [vmem:[%s291 + $0x1c] sm:$0xf]
        %v300 = vld [vmem:[%s291 + $0x20] sm:$0xf]
        %v301 = vld [vmem:[%s291 + $0x24] sm:$0xf]
        %v302 = vld [vmem:[%s291 + $0x28] sm:$0xf]
        %v303 = vld [vmem:[%s291 + $0x2c] sm:$0xf]
        %v304 = vld [vmem:[%s291 + $0x30] sm:$0xf]
        %v305 = vld [vmem:[%s291 + $0x34] sm:$0xf]
        %v306 = vld [vmem:[%s291 + $0x38] sm:$0xf]
        %v307 = vld [vmem:[%s291 + $0x3c] sm:$0xf]
        %v324 = vunpack.c.l.b16 %v292
        %v325 = vunpack.c.l.b16 %v293
        %v326 = vunpack.c.l.b16 %v294
        %v327 = vunpack.c.l.b16 %v295
        %v328 = vunpack.c.l.b16 %v296
        %v329 = vunpack.c.l.b16 %v297
        %v330 = vunpack.c.l.b16 %v298
        %v331 = vunpack.c.l.b16 %v299
        %v332 = vunpack.c.l.b16 %v300
        %v333 = vunpack.c.l.b16 %v301
        %v334 = vunpack.c.l.b16 %v302
        %v335 = vunpack.c.l.b16 %v303
        %v336 = vunpack.c.l.b16 %v304
        %v337 = vunpack.c.l.b16 %v305
        %v338 = vunpack.c.l.b16 %v306
        %v339 = vunpack.c.l.b16 %v307
        %v340 = vpack.c.b16 %v325, %v324
        %v341 = vpack.c.b16 %v327, %v326
        %v342 = vpack.c.b16 %v329, %v328
        %v343 = vpack.c.b16 %v331, %v330
        %v344 = vpack.c.b16 %v333, %v332
        %v345 = vpack.c.b16 %v335, %v334
        %v346 = vpack.c.b16 %v337, %v336
        %v347 = vpack.c.b16 %v339, %v338
        %s356 = scalar_lea.vmem [#allocation2], 24
        %357 = vst [vmem:[%s356 + $0x8] sm:$0xff] %v340
        %358 = vst [vmem:[%s356 + $0x20] sm:$0xff] %v341
        %359 = vst [vmem:[%s356 + $0x38] sm:$0xff] %v342
        %360 = vst [vmem:[%s356 + $0x50] sm:$0xff] %v343
        %361 = vst [vmem:[%s356 + $0x68] sm:$0xff] %v344
        %362 = vst [vmem:[%s356 + $0x80] sm:$0xff] %v345
        %363 = vst [vmem:[%s356 + $0x98] sm:$0xff] %v346
        %364 = vst [vmem:[%s356 + $0xb0] sm:$0xff] %v347
        %v366 = vshrl.u32 %v340, 16
        %v368 = vrot.slane %v366, 7
        %v369 = vshll.u32 %v340, 16
        %v371 = vor.u32 %v368, %v369
        %v373 = vshrl.u32 %v341, 16
        %v375 = vrot.slane %v373, 7
        %v376 = vshll.u32 %v341, 16
        %v378 = vor.u32 %v375, %v376
        %v380 = vshrl.u32 %v342, 16
        %v382 = vrot.slane %v380, 7
        %v383 = vshll.u32 %v342, 16
        %v385 = vor.u32 %v382, %v383
        %v387 = vshrl.u32 %v343, 16
        %v389 = vrot.slane %v387, 7
        %v390 = vshll.u32 %v343, 16
        %v392 = vor.u32 %v389, %v390
        %v394 = vshrl.u32 %v344, 16
        %v396 = vrot.slane %v394, 7
        %v397 = vshll.u32 %v344, 16
        %v399 = vor.u32 %v396, %v397
        %v401 = vshrl.u32 %v345, 16
        %v403 = vrot.slane %v401, 7
        %v404 = vshll.u32 %v345, 16
        %v406 = vor.u32 %v403, %v404
        %v408 = vshrl.u32 %v346, 16
        %v410 = vrot.slane %v408, 7
        %v411 = vshll.u32 %v346, 16
        %v413 = vor.u32 %v410, %v411
        %v415 = vshrl.u32 %v347, 16
        %v417 = vrot.slane %v415, 7
        %v418 = vshll.u32 %v347, 16
        %v420 = vor.u32 %v417, %v418
        %vm429 = vcmask 1047552
        %vm430 = vsmask.f32 7938
        %vm431 = vmand %vm429, %vm430
        %v432 = vld [vmem:[%s356] sm:$0xff]
        %v433 = vsel %vm431, %v371, %v432
        %434 = vst [vmem:[%s356] sm:$0xff] %v433
        %v435 = vld [vmem:[%s356 + $0x18] sm:$0xff]
        %v436 = vsel %vm431, %v378, %v435
        %437 = vst [vmem:[%s356 + $0x18] sm:$0xff] %v436
        %v438 = vld [vmem:[%s356 + $0x30] sm:$0xff]
        %v439 = vsel %vm431, %v385, %v438
        %440 = vst [vmem:[%s356 + $0x30] sm:$0xff] %v439
        %v441 = vld [vmem:[%s356 + $0x48] sm:$0xff]
        %v442 = vsel %vm431, %v392, %v441
        %443 = vst [vmem:[%s356 + $0x48] sm:$0xff] %v442
        %v444 = vld [vmem:[%s356 + $0x60] sm:$0xff]
        %v445 = vsel %vm431, %v399, %v444
        %446 = vst [vmem:[%s356 + $0x60] sm:$0xff] %v445
        %v447 = vld [vmem:[%s356 + $0x78] sm:$0xff]
        %v448 = vsel %vm431, %v406, %v447
        %449 = vst [vmem:[%s356 + $0x78] sm:$0xff] %v448
        %v450 = vld [vmem:[%s356 + $0x90] sm:$0xff]
        %v451 = vsel %vm431, %v413, %v450
        %452 = vst [vmem:[%s356 + $0x90] sm:$0xff] %v451
        %v453 = vld [vmem:[%s356 + $0xa8] sm:$0xff]
        %v454 = vsel %vm431, %v420, %v453
        %455 = vst [vmem:[%s356 + $0xa8] sm:$0xff] %v454
        %v456 = vrot.slane %v369, 1
        %v457 = vor.u32 %v366, %v456
        %v458 = vrot.slane %v376, 1
        %v459 = vor.u32 %v373, %v458
        %v460 = vrot.slane %v383, 1
        %v461 = vor.u32 %v380, %v460
        %v462 = vrot.slane %v390, 1
        %v463 = vor.u32 %v387, %v462
        %v464 = vrot.slane %v397, 1
        %v465 = vor.u32 %v394, %v464
        %v466 = vrot.slane %v404, 1
        %v467 = vor.u32 %v401, %v466
        %v468 = vrot.slane %v411, 1
        %v469 = vor.u32 %v408, %v468
        %v470 = vrot.slane %v418, 1
        %v471 = vor.u32 %v415, %v470
        %vm480 = vsmask.f32 7424
        %vm481 = vmand %vm429, %vm480
        %v482 = vld [vmem:[%s356 + $0x10] sm:$0xff]
        %v483 = vsel %vm481, %v457, %v482
        %484 = vst [vmem:[%s356 + $0x10] sm:$0xff] %v483
        %v485 = vld [vmem:[%s356 + $0x28] sm:$0xff]
        %v486 = vsel %vm481, %v459, %v485
        %487 = vst [vmem:[%s356 + $0x28] sm:$0xff] %v486
        %v488 = vld [vmem:[%s356 + $0x40] sm:$0xff]
        %v489 = vsel %vm481, %v461, %v488
        %490 = vst [vmem:[%s356 + $0x40] sm:$0xff] %v489
        %v491 = vld [vmem:[%s356 + $0x58] sm:$0xff]
        %v492 = vsel %vm481, %v463, %v491
        %493 = vst [vmem:[%s356 + $0x58] sm:$0xff] %v492
        %v494 = vld [vmem:[%s356 + $0x70] sm:$0xff]
        %v495 = vsel %vm481, %v465, %v494
        %496 = vst [vmem:[%s356 + $0x70] sm:$0xff] %v495
        %v497 = vld [vmem:[%s356 + $0x88] sm:$0xff]
        %v498 = vsel %vm481, %v467, %v497
        %499 = vst [vmem:[%s356 + $0x88] sm:$0xff] %v498
        %v500 = vld [vmem:[%s356 + $0xa0] sm:$0xff]
        %v501 = vsel %vm481, %v469, %v500
        %502 = vst [vmem:[%s356 + $0xa0] sm:$0xff] %v501
        %v503 = vld [vmem:[%s356 + $0xb8] sm:$0xff]
        %v504 = vsel %vm481, %v471, %v503
        %505 = vst [vmem:[%s356 + $0xb8] sm:$0xff] %v504
        %p506 = scmp.eq.s32.totalorder %s28, 0
        // Predicated region
        $region53: #{tpu_custom_call.1} parent=39 // pred_check
          %p507 = pneg %p506
        $region54: #{tpu_custom_call.1} parent=39 // pred_check_branch
          %509 = sbr.rel (%p507) target = $region56
        $region55: #{tpu_custom_call.1} parent=39 // pred_region
          %510 = vst [vmem:[#allocation2] sm:$0xff] 0
          %511 = vst [vmem:[#allocation2 + $0x8] sm:$0xff] 0
          %512 = vst [vmem:[#allocation2 + $0x10] sm:$0xff] 0
        $region56: #{tpu_custom_call.1} parent=39 // pred_fallthru
          _
        %p513 = scmp.gt.s32.totalorder %s28, 0
        // Predicated region
        $region57: #{tpu_custom_call.1} parent=39 // pred_check
          %p514 = pneg %p513
        $region58: #{tpu_custom_call.1} parent=39 // pred_check_branch
          %516 = sbr.rel (%p514) target = $region60
        $region59: #{tpu_custom_call.1} parent=39 // pred_region
          %s517 = ssub.s32 %s288, 1
          %s518 = smul.u32 %s517, 2
          %s519 = smul.addr %s518, 4
          %s520 = scalar_lea.vmem %s251, %s519 [#allocation4]
          %v521 = vld [vmem:[%s520] sm:$0xf]
          %v522 = vld [vmem:[%s520 + $0x4] sm:$0xf]
          %v525 = vunpack.c.l.b16 %v521
          %v526 = vunpack.c.l.b16 %v522
          %v527 = vpack.c.b16 %v526, %v525
          %529 = vst [vmem:[#allocation2 + $0x8] sm:$0xff] %v527
          %v531 = vshrl.u32 %v527, 16
          %v533 = vrot.slane %v531, 7
          %v534 = vshll.u32 %v527, 16
          %v536 = vor.u32 %v533, %v534
          %v538 = vld [vmem:[#allocation2] sm:$0xff]
          %v539 = vsel %vm431, %v536, %v538
          %540 = vst [vmem:[#allocation2] sm:$0xff] %v539
          %v541 = vrot.slane %v534, 1
          %v542 = vor.u32 %v531, %v541
          %v544 = vld [vmem:[#allocation2 + $0x10] sm:$0xff]
          %v545 = vsel %vm481, %v542, %v544
          %546 = vst [vmem:[#allocation2 + $0x10] sm:$0xff] %v545
        $region60: #{tpu_custom_call.1} parent=39 // pred_fallthru
          _
        %p547 = scmp.eq.s32.totalorder %s28, 1
        // Predicated region
        $region61: #{tpu_custom_call.1} parent=39 // pred_check
          %p548 = pneg %p547
        $region62: #{tpu_custom_call.1} parent=39 // pred_check_branch
          %550 = sbr.rel (%p548) target = $region64
        $region63: #{tpu_custom_call.1} parent=39 // pred_region
          %s551 = scalar_lea.vmem [#allocation2], 216
          %552 = vst [vmem:[%s551] sm:$0xff] 0
          %553 = vst [vmem:[%s551 + $0x8] sm:$0xff] 0
          %554 = vst [vmem:[%s551 + $0x10] sm:$0xff] 0
        $region64: #{tpu_custom_call.1} parent=39 // pred_fallthru
          _
        %p555 = scmp.lt.s32.totalorder %s28, 1
        // Predicated region
        $region65: #{tpu_custom_call.1} parent=39 // pred_check
          %p556 = pneg %p555
        $region66: #{tpu_custom_call.1} parent=39 // pred_check_branch
          %558 = sbr.rel (%p556) target = $region68
        $region67: #{tpu_custom_call.1} parent=39 // pred_region
          %s559 = sadd.s32 %s288, 8
          %s560 = smul.u32 %s559, 2
          %s561 = smul.addr %s560, 4
          %s562 = scalar_lea.vmem %s251, %s561 [#allocation4]
          %v563 = vld [vmem:[%s562] sm:$0xf]
          %v564 = vld [vmem:[%s562 + $0x4] sm:$0xf]
          %v567 = vunpack.c.l.b16 %v563
          %v568 = vunpack.c.l.b16 %v564
          %v569 = vpack.c.b16 %v568, %v567
          %s571 = scalar_lea.vmem [#allocation2], 216
          %572 = vst [vmem:[%s571 + $0x8] sm:$0xff] %v569
          %v574 = vshrl.u32 %v569, 16
          %v576 = vrot.slane %v574, 7
          %v577 = vshll.u32 %v569, 16
          %v579 = vor.u32 %v576, %v577
          %v581 = vld [vmem:[%s571] sm:$0xff]
          %v582 = vsel %vm431, %v579, %v581
          %583 = vst [vmem:[%s571] sm:$0xff] %v582
          %v584 = vrot.slane %v577, 1
          %v585 = vor.u32 %v574, %v584
          %v587 = vld [vmem:[%s571 + $0x10] sm:$0xff]
          %v588 = vsel %vm481, %v585, %v587
          %589 = vst [vmem:[%s571 + $0x10] sm:$0xff] %v588
        $region68: #{tpu_custom_call.1} parent=39 // pred_fallthru
          _
        %vm590 = vcmask 1040384
        %vm591 = vsmask.f32 256
        %vm592 = vmand %vm590, %vm591
        %v593 = vld [vmem:[#allocation2] sm:$0x1]
        %v594 = vsel %vm592, 0, %v593
        %595 = vst [vmem:[#allocation2] sm:$0x1] %v594
        %v596 = vld [vmem:[#allocation2 + $0x18] sm:$0x1]
        %v597 = vsel %vm592, 0, %v596
        %598 = vst [vmem:[#allocation2 + $0x18] sm:$0x1] %v597
        %v599 = vld [vmem:[#allocation2 + $0x30] sm:$0x1]
        %v600 = vsel %vm592, 0, %v599
        %601 = vst [vmem:[#allocation2 + $0x30] sm:$0x1] %v600
        %v602 = vld [vmem:[#allocation2 + $0x48] sm:$0x1]
        %v603 = vsel %vm592, 0, %v602
        %604 = vst [vmem:[#allocation2 + $0x48] sm:$0x1] %v603
        %v605 = vld [vmem:[#allocation2 + $0x60] sm:$0x1]
        %v606 = vsel %vm592, 0, %v605
        %607 = vst [vmem:[#allocation2 + $0x60] sm:$0x1] %v606
        %v608 = vld [vmem:[#allocation2 + $0x78] sm:$0x1]
        %v609 = vsel %vm592, 0, %v608
        %610 = vst [vmem:[#allocation2 + $0x78] sm:$0x1] %v609
        %v611 = vld [vmem:[#allocation2 + $0x90] sm:$0x1]
        %v612 = vsel %vm592, 0, %v611
        %613 = vst [vmem:[#allocation2 + $0x90] sm:$0x1] %v612
        %v614 = vld [vmem:[#allocation2 + $0xa8] sm:$0x1]
        %v615 = vsel %vm592, 0, %v614
        %616 = vst [vmem:[#allocation2 + $0xa8] sm:$0x1] %v615
        %v617 = vld [vmem:[#allocation2 + $0xc0] sm:$0x1]
        %v618 = vsel %vm592, 0, %v617
        %619 = vst [vmem:[#allocation2 + $0xc0] sm:$0x1] %v618
        %v620 = vld [vmem:[#allocation2 + $0xd8] sm:$0x1]
        %v621 = vsel %vm592, 0, %v620
        %622 = vst [vmem:[#allocation2 + $0xd8] sm:$0x1] %v621
        %vm623 = vcmask 1047559
        %vm624 = vsmask.f32 7966
        %vm625 = vmand %vm623, %vm624
        %v626 = vld [vmem:[#allocation2 + $0x10] sm:$0x80]
        %v627 = vsel %vm625, 0, %v626
        %628 = vst [vmem:[#allocation2 + $0x10] sm:$0x80] %v627
        %v629 = vld [vmem:[#allocation2 + $0x28] sm:$0x80]
        %v630 = vsel %vm625, 0, %v629
        %631 = vst [vmem:[#allocation2 + $0x28] sm:$0x80] %v630
        %v632 = vld [vmem:[#allocation2 + $0x40] sm:$0x80]
        %v633 = vsel %vm625, 0, %v632
        %634 = vst [vmem:[#allocation2 + $0x40] sm:$0x80] %v633
        %v635 = vld [vmem:[#allocation2 + $0x58] sm:$0x80]
        %v636 = vsel %vm625, 0, %v635
        %637 = vst [vmem:[#allocation2 + $0x58] sm:$0x80] %v636
        %v638 = vld [vmem:[#allocation2 + $0x70] sm:$0x80]
        %v639 = vsel %vm625, 0, %v638
        %640 = vst [vmem:[#allocation2 + $0x70] sm:$0x80] %v639
        %v641 = vld [vmem:[#allocation2 + $0x88] sm:$0x80]
        %v642 = vsel %vm625, 0, %v641
        %643 = vst [vmem:[#allocation2 + $0x88] sm:$0x80] %v642
        %v644 = vld [vmem:[#allocation2 + $0xa0] sm:$0x80]
        %v645 = vsel %vm625, 0, %v644
        %646 = vst [vmem:[#allocation2 + $0xa0] sm:$0x80] %v645
        %v647 = vld [vmem:[#allocation2 + $0xb8] sm:$0x80]
        %v648 = vsel %vm625, 0, %v647
        %649 = vst [vmem:[#allocation2 + $0xb8] sm:$0x80] %v648
        %v650 = vld [vmem:[#allocation2 + $0xd0] sm:$0x80]
        %v651 = vsel %vm625, 0, %v650
        %652 = vst [vmem:[#allocation2 + $0xd0] sm:$0x80] %v651
        %v653 = vld [vmem:[#allocation2 + $0xe8] sm:$0x80]
        %v654 = vsel %vm625, 0, %v653
        %655 = vst [vmem:[#allocation2 + $0xe8] sm:$0x80] %v654
        %v656 = vld [vmem:[#allocation2] sm:$0xff]
        %v657 = vld [vmem:[#allocation2 + $0x8] sm:$0xff]
        %v658 = vld [vmem:[#allocation2 + $0x10] sm:$0xff]
        %v659 = vld [vmem:[#allocation2 + $0x18] sm:$0xff]
        %v660 = vld [vmem:[#allocation2 + $0x20] sm:$0xff]
        %v661 = vld [vmem:[#allocation2 + $0x28] sm:$0xff]
        %v662 = vld [vmem:[#allocation2 + $0x30] sm:$0xff]
        %v663 = vld [vmem:[#allocation2 + $0x38] sm:$0xff]
        %v664 = vld [vmem:[#allocation2 + $0x40] sm:$0xff]
        %v665 = vld [vmem:[#allocation2 + $0x48] sm:$0xff]
        %v666 = vld [vmem:[#allocation2 + $0x50] sm:$0xff]
        %v667 = vld [vmem:[#allocation2 + $0x58] sm:$0xff]
        %v668 = vld [vmem:[#allocation2 + $0x60] sm:$0xff]
        %v669 = vld [vmem:[#allocation2 + $0x68] sm:$0xff]
        %v670 = vld [vmem:[#allocation2 + $0x70] sm:$0xff]
        %v671 = vld [vmem:[#allocation2 + $0x78] sm:$0xff]
        %v672 = vld [vmem:[#allocation2 + $0x80] sm:$0xff]
        %v673 = vld [vmem:[#allocation2 + $0x88] sm:$0xff]
        %v674 = vld [vmem:[#allocation2 + $0x90] sm:$0xff]
        %v675 = vld [vmem:[#allocation2 + $0x98] sm:$0xff]
        %v676 = vld [vmem:[#allocation2 + $0xa0] sm:$0xff]
        %v677 = vld [vmem:[#allocation2 + $0xa8] sm:$0xff]
        %v678 = vld [vmem:[#allocation2 + $0xb0] sm:$0xff]
        %v679 = vld [vmem:[#allocation2 + $0xb8] sm:$0xff]
        %v680 = vld [vmem:[#allocation7] sm:$0xf]
        %v681 = vld [vmem:[#allocation7 + $0x4] sm:$0xf]
        %v682 = vld [vmem:[#allocation7 + $0x8] sm:$0xf]
        %v683 = vld [vmem:[#allocation7 + $0xc] sm:$0xf]
        %v684 = vld [vmem:[#allocation7 + $0x10] sm:$0xf]
        %v685 = vld [vmem:[#allocation7 + $0x14] sm:$0xf]
        %v686 = vld [vmem:[#allocation7 + $0x18] sm:$0xf]
        %v687 = vld [vmem:[#allocation7 + $0x1c] sm:$0xf]
        %v688 = vld [vmem:[#allocation7 + $0x20] sm:$0xf]
        %v689 = vld [vmem:[#allocation7 + $0x24] sm:$0xf]
        %v690 = vld [vmem:[#allocation7 + $0x28] sm:$0xf]
        %v691 = vld [vmem:[#allocation7 + $0x2c] sm:$0xf]
        %v692 = vld [vmem:[#allocation7 + $0x30] sm:$0xf]
        %v693 = vld [vmem:[#allocation7 + $0x34] sm:$0xf]
        %v694 = vld [vmem:[#allocation7 + $0x38] sm:$0xf]
        %v695 = vld [vmem:[#allocation7 + $0x3c] sm:$0xf]
        %v696 = vld [vmem:[#allocation7 + $0x40] sm:$0xf]
        %v697 = vld [vmem:[#allocation7 + $0x44] sm:$0xf]
        %v698 = vld [vmem:[#allocation7 + $0x48] sm:$0xf]
        %v699 = vld [vmem:[#allocation7 + $0x4c] sm:$0xf]
        %v700 = vld [vmem:[#allocation7 + $0x50] sm:$0xf]
        %v701 = vld [vmem:[#allocation7 + $0x54] sm:$0xf]
        %v702 = vld [vmem:[#allocation7 + $0x58] sm:$0xf]
        %v703 = vld [vmem:[#allocation7 + $0x5c] sm:$0xf]
        %v704 = vld [vmem:[#allocation7 + $0x60] sm:$0xf]
        %v705 = vld [vmem:[#allocation7 + $0x64] sm:$0xf]
        %v706 = vld [vmem:[#allocation7 + $0x68] sm:$0xf]
        %v707 = vld [vmem:[#allocation7 + $0x6c] sm:$0xf]
        %v708 = vld [vmem:[#allocation7 + $0x70] sm:$0xf]
        %v709 = vld [vmem:[#allocation7 + $0x74] sm:$0xf]
        %v710 = vld [vmem:[#allocation7 + $0x78] sm:$0xf]
        %v711 = vld [vmem:[#allocation7 + $0x7c] sm:$0xf]
        %v712 = vld [vmem:[#allocation7 + $0x80] sm:$0xf]
        %v713 = vld [vmem:[#allocation7 + $0x84] sm:$0xf]
        %v714 = vld [vmem:[#allocation7 + $0x88] sm:$0xf]
        %v715 = vld [vmem:[#allocation7 + $0x8c] sm:$0xf]
        %v716 = vld [vmem:[#allocation7 + $0x90] sm:$0xf]
        %v717 = vld [vmem:[#allocation7 + $0x94] sm:$0xf]
        %v718 = vld [vmem:[#allocation7 + $0x98] sm:$0xf]
        %v719 = vld [vmem:[#allocation7 + $0x9c] sm:$0xf]
        %v720 = vld [vmem:[#allocation7 + $0xa0] sm:$0xf]
        %v721 = vld [vmem:[#allocation7 + $0xa4] sm:$0xf]
        %v722 = vld [vmem:[#allocation7 + $0xa8] sm:$0xf]
        %v723 = vld [vmem:[#allocation7 + $0xac] sm:$0xf]
        %v724 = vld [vmem:[#allocation7 + $0xb0] sm:$0xf]
        %v725 = vld [vmem:[#allocation7 + $0xb4] sm:$0xf]
        %v726 = vld [vmem:[#allocation7 + $0xb8] sm:$0xf]
        %v727 = vld [vmem:[#allocation7 + $0xbc] sm:$0xf]
        %v776 = vunpack.c.l.b16 %v680
        %v777 = vunpack.c.l.b16 %v681
        %v778 = vunpack.c.l.b16 %v682
        %v779 = vunpack.c.l.b16 %v683
        %v780 = vunpack.c.l.b16 %v684
        %v781 = vunpack.c.l.b16 %v685
        %v782 = vunpack.c.l.b16 %v686
        %v783 = vunpack.c.l.b16 %v687
        %v784 = vunpack.c.l.b16 %v688
        %v785 = vunpack.c.l.b16 %v689
        %v786 = vunpack.c.l.b16 %v690
        %v787 = vunpack.c.l.b16 %v691
        %v788 = vunpack.c.l.b16 %v692
        %v789 = vunpack.c.l.b16 %v693
        %v790 = vunpack.c.l.b16 %v694
        %v791 = vunpack.c.l.b16 %v695
        %v792 = vunpack.c.l.b16 %v696
        %v793 = vunpack.c.l.b16 %v697
        %v794 = vunpack.c.l.b16 %v698
        %v795 = vunpack.c.l.b16 %v699
        %v796 = vunpack.c.l.b16 %v700
        %v797 = vunpack.c.l.b16 %v701
        %v798 = vunpack.c.l.b16 %v702
        %v799 = vunpack.c.l.b16 %v703
        %v800 = vunpack.c.l.b16 %v704
        %v801 = vunpack.c.l.b16 %v705
        %v802 = vunpack.c.l.b16 %v706
        %v803 = vunpack.c.l.b16 %v707
        %v804 = vunpack.c.l.b16 %v708
        %v805 = vunpack.c.l.b16 %v709
        %v806 = vunpack.c.l.b16 %v710
        %v807 = vunpack.c.l.b16 %v711
        %v808 = vunpack.c.l.b16 %v712
        %v809 = vunpack.c.l.b16 %v713
        %v810 = vunpack.c.l.b16 %v714
        %v811 = vunpack.c.l.b16 %v715
        %v812 = vunpack.c.l.b16 %v716
        %v813 = vunpack.c.l.b16 %v717
        %v814 = vunpack.c.l.b16 %v718
        %v815 = vunpack.c.l.b16 %v719
        %v816 = vunpack.c.l.b16 %v720
        %v817 = vunpack.c.l.b16 %v721
        %v818 = vunpack.c.l.b16 %v722
        %v819 = vunpack.c.l.b16 %v723
        %v820 = vunpack.c.l.b16 %v724
        %v821 = vunpack.c.l.b16 %v725
        %v822 = vunpack.c.l.b16 %v726
        %v823 = vunpack.c.l.b16 %v727
        %v824 = vpack.c.b16 %v777, %v776
        %v825 = vpack.c.b16 %v779, %v778
        %v826 = vpack.c.b16 %v781, %v780
        %v827 = vpack.c.b16 %v783, %v782
        %v828 = vpack.c.b16 %v785, %v784
        %v829 = vpack.c.b16 %v787, %v786
        %v830 = vpack.c.b16 %v789, %v788
        %v831 = vpack.c.b16 %v791, %v790
        %v832 = vpack.c.b16 %v793, %v792
        %v833 = vpack.c.b16 %v795, %v794
        %v834 = vpack.c.b16 %v797, %v796
        %v835 = vpack.c.b16 %v799, %v798
        %v836 = vpack.c.b16 %v801, %v800
        %v837 = vpack.c.b16 %v803, %v802
        %v838 = vpack.c.b16 %v805, %v804
        %v839 = vpack.c.b16 %v807, %v806
        %v840 = vpack.c.b16 %v809, %v808
        %v841 = vpack.c.b16 %v811, %v810
        %v842 = vpack.c.b16 %v813, %v812
        %v843 = vpack.c.b16 %v815, %v814
        %v844 = vpack.c.b16 %v817, %v816
        %v845 = vpack.c.b16 %v819, %v818
        %v846 = vpack.c.b16 %v821, %v820
        %v847 = vpack.c.b16 %v823, %v822
        %872 = vmatprep.subr.bf16.mxu0 0
        %873 = vmatpush1.bf16.msra.mxu0 %v824
        %874 = vmatprep.subr.bf16.mxu0 0
        %875 = vmatpush1.bf16.msra.mxu0 %v825
        %876 = vmatprep.subr.bf16.mxu0 0
        %877 = vmatpush1.bf16.msra.mxu0 %v826
        %878 = vmatprep.subr.bf16.mxu0 0
        %879 = vmatpush1.bf16.msra.mxu0 %v827
        %880 = vmatprep.subr.bf16.mxu0 0
        %881 = vmatpush1.bf16.msra.mxu0 %v828
        %882 = vmatprep.subr.bf16.mxu0 0
        %883 = vmatpush1.bf16.msra.mxu0 %v829
        %884 = vmatprep.subr.bf16.mxu0 0
        %885 = vmatpush1.bf16.msra.mxu0 %v830
        %886 = vmatprep.subr.bf16.mxu0 0
        %887 = vmatpush1.bf16.msra.mxu0 %v831
        %888 = vmatprep.subr.bf16.mxu0 0
        %889 = vmatpush1.bf16.msra.mxu0 %v832
        %890 = vmatprep.subr.bf16.mxu0 0
        %891 = vmatpush1.bf16.msra.mxu0 %v833
        %892 = vmatprep.subr.bf16.mxu0 0
        %893 = vmatpush1.bf16.msra.mxu0 %v834
        %894 = vmatprep.subr.bf16.mxu0 0
        %895 = vmatpush1.bf16.msra.mxu0 %v835
        %896 = vmatprep.subr.bf16.mxu0 0
        %897 = vmatpush1.bf16.msra.mxu0 %v836
        %898 = vmatprep.subr.bf16.mxu0 0
        %899 = vmatpush1.bf16.msra.mxu0 %v837
        %900 = vmatprep.subr.bf16.mxu0 0
        %901 = vmatpush1.bf16.msra.mxu0 %v838
        %902 = vmatprep.subr.bf16.mxu0 0
        %903 = vmatpush1.bf16.msra.mxu0 %v839
        %904 = vmatprep.mubr.bf16.mxu0 %v657
        %905 = vmatmul.mubr.bf16.gmra.mrb[0].mxu0 %v656
        %v906 = vpop.f32.mrb[0].mxu0
        %v907 = vadd.f32 0.0, %v906
        %v908 = vpop.f32.mrb[0].mxu0
        %v909 = vpop.f32.mrb[0].mxu0
        %v910 = vadd.f32 0.0, %v909
        %v911 = vpop.f32.mrb[0].mxu0
        %912 = vmatprep.mubr.bf16.mxu0 %v660
        %913 = vmatmul.mubr.bf16.gmra.mrb[0].mxu0 %v659
        %v914 = vpop.f32.mrb[0].mxu0
        %v915 = vadd.f32 0.0, %v914
        %v916 = vpop.f32.mrb[0].mxu0
        %v917 = vpop.f32.mrb[0].mxu0
        %v918 = vadd.f32 0.0, %v917
        %v919 = vpop.f32.mrb[0].mxu0
        %920 = vmatprep.mubr.bf16.mxu0 %v663
        %921 = vmatmul.mubr.bf16.gmra.mrb[0].mxu0 %v662
        %v922 = vpop.f32.mrb[0].mxu0
        %v923 = vadd.f32 0.0, %v922
        %v924 = vpop.f32.mrb[0].mxu0
        %v925 = vpop.f32.mrb[0].mxu0
        %v926 = vadd.f32 0.0, %v925
        %v927 = vpop.f32.mrb[0].mxu0
        %928 = vmatprep.mubr.bf16.mxu0 %v666
        %929 = vmatmul.mubr.bf16.gmra.mrb[0].mxu0 %v665
        %v930 = vpop.f32.mrb[0].mxu0
        %v931 = vadd.f32 0.0, %v930
        %v932 = vpop.f32.mrb[0].mxu0
        %v933 = vpop.f32.mrb[0].mxu0
        %v934 = vadd.f32 0.0, %v933
        %v935 = vpop.f32.mrb[0].mxu0
        %936 = vmatprep.mubr.bf16.mxu0 %v669
        %937 = vmatmul.mubr.bf16.gmra.mrb[0].mxu0 %v668
        %v938 = vpop.f32.mrb[0].mxu0
        %v939 = vadd.f32 0.0, %v938
        %v940 = vpop.f32.mrb[0].mxu0
        %v941 = vpop.f32.mrb[0].mxu0
        %v942 = vadd.f32 0.0, %v941
        %v943 = vpop.f32.mrb[0].mxu0
        %944 = vmatprep.mubr.bf16.mxu0 %v672
        %945 = vmatmul.mubr.bf16.gmra.mrb[0].mxu0 %v671
        %v946 = vpop.f32.mrb[0].mxu0
        %v947 = vadd.f32 0.0, %v946
        %v948 = vpop.f32.mrb[0].mxu0
        %v949 = vpop.f32.mrb[0].mxu0
        %v950 = vadd.f32 0.0, %v949
        %v951 = vpop.f32.mrb[0].mxu0
        %952 = vmatprep.mubr.bf16.mxu0 %v675
        %953 = vmatmul.mubr.bf16.gmra.mrb[0].mxu0 %v674
        %v954 = vpop.f32.mrb[0].mxu0
        %v955 = vadd.f32 0.0, %v954
        %v956 = vpop.f32.mrb[0].mxu0
        %v957 = vpop.f32.mrb[0].mxu0
        %v958 = vadd.f32 0.0, %v957
        %v959 = vpop.f32.mrb[0].mxu0
        %960 = vmatprep.mubr.bf16.mxu0 %v678
        %961 = vmatmul.mubr.bf16.gmra.mrb[0].mxu0 %v677
        %v962 = vpop.f32.mrb[0].mxu0
        %v963 = vadd.f32 0.0, %v962
        %v964 = vpop.f32.mrb[0].mxu0
        %v965 = vpop.f32.mrb[0].mxu0
        %v966 = vadd.f32 0.0, %v965
        %v967 = vpop.f32.mrb[0].mxu0
        %968 = vdwg.mxu0
        %969 = vmatprep.subr.bf16.mxu0 0
        %970 = vmatpush1.bf16.msra.mxu0 %v840
        %971 = vmatprep.subr.bf16.mxu0 0
        %972 = vmatpush1.bf16.msra.mxu0 %v841
        %973 = vmatprep.subr.bf16.mxu0 0
        %974 = vmatpush1.bf16.msra.mxu0 %v842
        %975 = vmatprep.subr.bf16.mxu0 0
        %976 = vmatpush1.bf16.msra.mxu0 %v843
        %977 = vmatprep.subr.bf16.mxu0 0
        %978 = vmatpush1.bf16.msra.mxu0 %v844
        %979 = vmatprep.subr.bf16.mxu0 0
        %980 = vmatpush1.bf16.msra.mxu0 %v845
        %981 = vmatprep.subr.bf16.mxu0 0
        %982 = vmatpush1.bf16.msra.mxu0 %v846
        %983 = vmatprep.subr.bf16.mxu0 0
        %984 = vmatpush1.bf16.msra.mxu0 %v847
        %985 = vmatprep.subr.bf16.mxu0 0
        %986 = vmatpush1.bf16.msra.mxu0 0
        %987 = vmatprep.subr.bf16.mxu0 0
        %988 = vmatpush1.bf16.msra.mxu0 0
        %989 = vmatprep.subr.bf16.mxu0 0
        %990 = vmatpush1.bf16.msra.mxu0 0
        %991 = vmatprep.subr.bf16.mxu0 0
        %992 = vmatpush1.bf16.msra.mxu0 0
        %993 = vmatprep.subr.bf16.mxu0 0
        %994 = vmatpush1.bf16.msra.mxu0 0
        %995 = vmatprep.subr.bf16.mxu0 0
        %996 = vmatpush1.bf16.msra.mxu0 0
        %997 = vmatprep.subr.bf16.mxu0 0
        %998 = vmatpush1.bf16.msra.mxu0 0
        %999 = vmatprep.subr.bf16.mxu0 0
        %1000 = vmatpush1.bf16.msra.mxu0 0
        %1001 = vmatprep.mubr.bf16.mxu0 0
        %1002 = vmatmul.mubr.bf16.gmra.mrb[0].mxu0 %v658
        %v1003 = vpop.f32.mrb[0].mxu0
        %v1004 = vadd.f32 %v907, %v1003
        %v1005 = vpop.f32.mrb[0].mxu0
        %v1006 = vpop.f32.mrb[0].mxu0
        %v1007 = vadd.f32 %v910, %v1006
        %v1008 = vpop.f32.mrb[0].mxu0
        %1009 = vmatprep.mubr.bf16.mxu0 0
        %1010 = vmatmul.mubr.bf16.gmra.mrb[0].mxu0 %v661
        %v1011 = vpop.f32.mrb[0].mxu0
        %v1012 = vadd.f32 %v915, %v1011
        %v1013 = vpop.f32.mrb[0].mxu0
        %v1014 = vpop.f32.mrb[0].mxu0
        %v1015 = vadd.f32 %v918, %v1014
        %v1016 = vpop.f32.mrb[0].mxu0
        %1017 = vmatprep.mubr.bf16.mxu0 0
        %1018 = vmatmul.mubr.bf16.gmra.mrb[0].mxu0 %v664
        %v1019 = vpop.f32.mrb[0].mxu0
        %v1020 = vadd.f32 %v923, %v1019
        %v1021 = vpop.f32.mrb[0].mxu0
        %v1022 = vpop.f32.mrb[0].mxu0
        %v1023 = vadd.f32 %v926, %v1022
        %v1024 = vpop.f32.mrb[0].mxu0
        %1025 = vmatprep.mubr.bf16.mxu0 0
        %1026 = vmatmul.mubr.bf16.gmra.mrb[0].mxu0 %v667
        %v1027 = vpop.f32.mrb[0].mxu0
        %v1028 = vadd.f32 %v931, %v1027
        %v1029 = vpop.f32.mrb[0].mxu0
        %v1030 = vpop.f32.mrb[0].mxu0
        %v1031 = vadd.f32 %v934, %v1030
        %v1032 = vpop.f32.mrb[0].mxu0
        %1033 = vmatprep.mubr.bf16.mxu0 0
        %1034 = vmatmul.mubr.bf16.gmra.mrb[0].mxu0 %v670
        %v1035 = vpop.f32.mrb[0].mxu0
        %v1036 = vadd.f32 %v939, %v1035
        %v1037 = vpop.f32.mrb[0].mxu0
        %v1038 = vpop.f32.mrb[0].mxu0
        %v1039 = vadd.f32 %v942, %v1038
        %v1040 = vpop.f32.mrb[0].mxu0
        %1041 = vmatprep.mubr.bf16.mxu0 0
        %1042 = vmatmul.mubr.bf16.gmra.mrb[0].mxu0 %v673
        %v1043 = vpop.f32.mrb[0].mxu0
        %v1044 = vadd.f32 %v947, %v1043
        %v1045 = vpop.f32.mrb[0].mxu0
        %v1046 = vpop.f32.mrb[0].mxu0
        %v1047 = vadd.f32 %v950, %v1046
        %v1048 = vpop.f32.mrb[0].mxu0
        %1049 = vmatprep.mubr.bf16.mxu0 0
        %1050 = vmatmul.mubr.bf16.gmra.mrb[0].mxu0 %v676
        %v1051 = vpop.f32.mrb[0].mxu0
        %v1052 = vadd.f32 %v955, %v1051
        %v1053 = vpop.f32.mrb[0].mxu0
        %v1054 = vpop.f32.mrb[0].mxu0
        %v1055 = vadd.f32 %v958, %v1054
        %v1056 = vpop.f32.mrb[0].mxu0
        %1057 = vmatprep.mubr.bf16.mxu0 0
        %1058 = vmatmul.mubr.bf16.gmra.mrb[0].mxu0 %v679
        %v1059 = vpop.f32.mrb[0].mxu0
        %v1060 = vadd.f32 %v963, %v1059
        %v1061 = vpop.f32.mrb[0].mxu0
        %v1062 = vpop.f32.mrb[0].mxu0
        %v1063 = vadd.f32 %v966, %v1062
        %v1064 = vpop.f32.mrb[0].mxu0
        %1065 = vdwg.mxu0
        %1066 = vst [vmem:[#allocation3] sm:$0xff] %v1004
        %1067 = vst [vmem:[#allocation3 + $0x8] sm:$0xff] %v1007
        %1068 = vst [vmem:[#allocation3 + $0x10] sm:$0xff] %v1012
        %1069 = vst [vmem:[#allocation3 + $0x18] sm:$0xff] %v1015
        %1070 = vst [vmem:[#allocation3 + $0x20] sm:$0xff] %v1020
        %1071 = vst [vmem:[#allocation3 + $0x28] sm:$0xff] %v1023
        %1072 = vst [vmem:[#allocation3 + $0x30] sm:$0xff] %v1028
        %1073 = vst [vmem:[#allocation3 + $0x38] sm:$0xff] %v1031
        %1074 = vst [vmem:[#allocation3 + $0x40] sm:$0xff] %v1036
        %1075 = vst [vmem:[#allocation3 + $0x48] sm:$0xff] %v1039
        %1076 = vst [vmem:[#allocation3 + $0x50] sm:$0xff] %v1044
        %1077 = vst [vmem:[#allocation3 + $0x58] sm:$0xff] %v1047
        %1078 = vst [vmem:[#allocation3 + $0x60] sm:$0xff] %v1052
        %1079 = vst [vmem:[#allocation3 + $0x68] sm:$0xff] %v1055
        %1080 = vst [vmem:[#allocation3 + $0x70] sm:$0xff] %v1060
        %1081 = vst [vmem:[#allocation3 + $0x78] sm:$0xff] %v1063
        %v1082 = vld [vmem:[%s356] sm:$0xff]
        %v1083 = vld [vmem:[%s356 + $0x8] sm:$0xff]
        %v1084 = vld [vmem:[%s356 + $0x10] sm:$0xff]
        %v1085 = vld [vmem:[%s356 + $0x18] sm:$0xff]
        %v1086 = vld [vmem:[%s356 + $0x20] sm:$0xff]
        %v1087 = vld [vmem:[%s356 + $0x28] sm:$0xff]
        %v1088 = vld [vmem:[%s356 + $0x30] sm:$0xff]
        %v1089 = vld [vmem:[%s356 + $0x38] sm:$0xff]
        %v1090 = vld [vmem:[%s356 + $0x40] sm:$0xff]
        %v1091 = vld [vmem:[%s356 + $0x48] sm:$0xff]
        %v1092 = vld [vmem:[%s356 + $0x50] sm:$0xff]
        %v1093 = vld [vmem:[%s356 + $0x58] sm:$0xff]
        %v1094 = vld [vmem:[%s356 + $0x60] sm:$0xff]
        %v1095 = vld [vmem:[%s356 + $0x68] sm:$0xff]
        %v1096 = vld [vmem:[%s356 + $0x70] sm:$0xff]
        %v1097 = vld [vmem:[%s356 + $0x78] sm:$0xff]
        %v1098 = vld [vmem:[%s356 + $0x80] sm:$0xff]
        %v1099 = vld [vmem:[%s356 + $0x88] sm:$0xff]
        %v1100 = vld [vmem:[%s356 + $0x90] sm:$0xff]
        %v1101 = vld [vmem:[%s356 + $0x98] sm:$0xff]
        %v1102 = vld [vmem:[%s356 + $0xa0] sm:$0xff]
        %v1103 = vld [vmem:[%s356 + $0xa8] sm:$0xff]
        %v1104 = vld [vmem:[%s356 + $0xb0] sm:$0xff]
        %v1105 = vld [vmem:[%s356 + $0xb8] sm:$0xff]
        %v1106 = vld [vmem:[#allocation3] sm:$0xff]
        %v1107 = vld [vmem:[#allocation3 + $0x8] sm:$0xff]
        %v1108 = vld [vmem:[#allocation3 + $0x10] sm:$0xff]
        %v1109 = vld [vmem:[#allocation3 + $0x18] sm:$0xff]
        %v1110 = vld [vmem:[#allocation3 + $0x20] sm:$0xff]
        %v1111 = vld [vmem:[#allocation3 + $0x28] sm:$0xff]
        %v1112 = vld [vmem:[#allocation3 + $0x30] sm:$0xff]
        %v1113 = vld [vmem:[#allocation3 + $0x38] sm:$0xff]
        %v1114 = vld [vmem:[#allocation3 + $0x40] sm:$0xff]
        %v1115 = vld [vmem:[#allocation3 + $0x48] sm:$0xff]
        %v1116 = vld [vmem:[#allocation3 + $0x50] sm:$0xff]
        %v1117 = vld [vmem:[#allocation3 + $0x58] sm:$0xff]
        %v1118 = vld [vmem:[#allocation3 + $0x60] sm:$0xff]
        %v1119 = vld [vmem:[#allocation3 + $0x68] sm:$0xff]
        %v1120 = vld [vmem:[#allocation3 + $0x70] sm:$0xff]
        %v1121 = vld [vmem:[#allocation3 + $0x78] sm:$0xff]
        %s1122 = scalar_lea.vmem [#allocation7], 192
        %v1123 = vld [vmem:[%s1122] sm:$0xf]
        %v1124 = vld [vmem:[%s1122 + $0x4] sm:$0xf]
        %v1125 = vld [vmem:[%s1122 + $0x8] sm:$0xf]
        %v1126 = vld [vmem:[%s1122 + $0xc] sm:$0xf]
        %v1127 = vld [vmem:[%s1122 + $0x10] sm:$0xf]
        %v1128 = vld [vmem:[%s1122 + $0x14] sm:$0xf]
        %v1129 = vld [vmem:[%s1122 + $0x18] sm:$0xf]
        %v1130 = vld [vmem:[%s1122 + $0x1c] sm:$0xf]
        %v1131 = vld [vmem:[%s1122 + $0x20] sm:$0xf]
        %v1132 = vld [vmem:[%s1122 + $0x24] sm:$0xf]
        %v1133 = vld [vmem:[%s1122 + $0x28] sm:$0xf]
        %v1134 = vld [vmem:[%s1122 + $0x2c] sm:$0xf]
        %v1135 = vld [vmem:[%s1122 + $0x30] sm:$0xf]
        %v1136 = vld [vmem:[%s1122 + $0x34] sm:$0xf]
        %v1137 = vld [vmem:[%s1122 + $0x38] sm:$0xf]
        %v1138 = vld [vmem:[%s1122 + $0x3c] sm:$0xf]
        %v1139 = vld [vmem:[%s1122 + $0x40] sm:$0xf]
        %v1140 = vld [vmem:[%s1122 + $0x44] sm:$0xf]
        %v1141 = vld [vmem:[%s1122 + $0x48] sm:$0xf]
        %v1142 = vld [vmem:[%s1122 + $0x4c] sm:$0xf]
        %v1143 = vld [vmem:[%s1122 + $0x50] sm:$0xf]
        %v1144 = vld [vmem:[%s1122 + $0x54] sm:$0xf]
        %v1145 = vld [vmem:[%s1122 + $0x58] sm:$0xf]
        %v1146 = vld [vmem:[%s1122 + $0x5c] sm:$0xf]
        %v1147 = vld [vmem:[%s1122 + $0x60] sm:$0xf]
        %v1148 = vld [vmem:[%s1122 + $0x64] sm:$0xf]
        %v1149 = vld [vmem:[%s1122 + $0x68] sm:$0xf]
        %v1150 = vld [vmem:[%s1122 + $0x6c] sm:$0xf]
        %v1151 = vld [vmem:[%s1122 + $0x70] sm:$0xf]
        %v1152 = vld [vmem:[%s1122 + $0x74] sm:$0xf]
        %v1153 = vld [vmem:[%s1122 + $0x78] sm:$0xf]
        %v1154 = vld [vmem:[%s1122 + $0x7c] sm:$0xf]
        %v1155 = vld [vmem:[%s1122 + $0x80] sm:$0xf]
        %v1156 = vld [vmem:[%s1122 + $0x84] sm:$0xf]
        %v1157 = vld [vmem:[%s1122 + $0x88] sm:$0xf]
        %v1158 = vld [vmem:[%s1122 + $0x8c] sm:$0xf]
        %v1159 = vld [vmem:[%s1122 + $0x90] sm:$0xf]
        %v1160 = vld [vmem:[%s1122 + $0x94] sm:$0xf]
        %v1161 = vld [vmem:[%s1122 + $0x98] sm:$0xf]
        %v1162 = vld [vmem:[%s1122 + $0x9c] sm:$0xf]
        %v1163 = vld [vmem:[%s1122 + $0xa0] sm:$0xf]
        %v1164 = vld [vmem:[%s1122 + $0xa4] sm:$0xf]
        %v1165 = vld [vmem:[%s1122 + $0xa8] sm:$0xf]
        %v1166 = vld [vmem:[%s1122 + $0xac] sm:$0xf]
        %v1167 = vld [vmem:[%s1122 + $0xb0] sm:$0xf]
        %v1168 = vld [vmem:[%s1122 + $0xb4] sm:$0xf]
        %v1169 = vld [vmem:[%s1122 + $0xb8] sm:$0xf]
        %v1170 = vld [vmem:[%s1122 + $0xbc] sm:$0xf]
        %v1219 = vunpack.c.l.b16 %v1123
        %v1220 = vunpack.c.l.b16 %v1124
        %v1221 = vunpack.c.l.b16 %v1125
        %v1222 = vunpack.c.l.b16 %v1126
        %v1223 = vunpack.c.l.b16 %v1127
        %v1224 = vunpack.c.l.b16 %v1128
        %v1225 = vunpack.c.l.b16 %v1129
        %v1226 = vunpack.c.l.b16 %v1130
        %v1227 = vunpack.c.l.b16 %v1131
        %v1228 = vunpack.c.l.b16 %v1132
        %v1229 = vunpack.c.l.b16 %v1133
        %v1230 = vunpack.c.l.b16 %v1134
        %v1231 = vunpack.c.l.b16 %v1135
        %v1232 = vunpack.c.l.b16 %v1136
        %v1233 = vunpack.c.l.b16 %v1137
        %v1234 = vunpack.c.l.b16 %v1138
        %v1235 = vunpack.c.l.b16 %v1139
        %v1236 = vunpack.c.l.b16 %v1140
        %v1237 = vunpack.c.l.b16 %v1141
        %v1238 = vunpack.c.l.b16 %v1142
        %v1239 = vunpack.c.l.b16 %v1143
        %v1240 = vunpack.c.l.b16 %v1144
        %v1241 = vunpack.c.l.b16 %v1145
        %v1242 = vunpack.c.l.b16 %v1146
        %v1243 = vunpack.c.l.b16 %v1147
        %v1244 = vunpack.c.l.b16 %v1148
        %v1245 = vunpack.c.l.b16 %v1149
        %v1246 = vunpack.c.l.b16 %v1150
        %v1247 = vunpack.c.l.b16 %v1151
        %v1248 = vunpack.c.l.b16 %v1152
        %v1249 = vunpack.c.l.b16 %v1153
        %v1250 = vunpack.c.l.b16 %v1154
        %v1251 = vunpack.c.l.b16 %v1155
        %v1252 = vunpack.c.l.b16 %v1156
        %v1253 = vunpack.c.l.b16 %v1157
        %v1254 = vunpack.c.l.b16 %v1158
        %v1255 = vunpack.c.l.b16 %v1159
        %v1256 = vunpack.c.l.b16 %v1160
        %v1257 = vunpack.c.l.b16 %v1161
        %v1258 = vunpack.c.l.b16 %v1162
        %v1259 = vunpack.c.l.b16 %v1163
        %v1260 = vunpack.c.l.b16 %v1164
        %v1261 = vunpack.c.l.b16 %v1165
        %v1262 = vunpack.c.l.b16 %v1166
        %v1263 = vunpack.c.l.b16 %v1167
        %v1264 = vunpack.c.l.b16 %v1168
        %v1265 = vunpack.c.l.b16 %v1169
        %v1266 = vunpack.c.l.b16 %v1170
        %v1267 = vpack.c.b16 %v1220, %v1219
        %v1268 = vpack.c.b16 %v1222, %v1221
        %v1269 = vpack.c.b16 %v1224, %v1223
        %v1270 = vpack.c.b16 %v1226, %v1225
        %v1271 = vpack.c.b16 %v1228, %v1227
        %v1272 = vpack.c.b16 %v1230, %v1229
        %v1273 = vpack.c.b16 %v1232, %v1231
        %v1274 = vpack.c.b16 %v1234, %v1233
        %v1275 = vpack.c.b16 %v1236, %v1235
        %v1276 = vpack.c.b16 %v1238, %v1237
        %v1277 = vpack.c.b16 %v1240, %v1239
        %v1278 = vpack.c.b16 %v1242, %v1241
        %v1279 = vpack.c.b16 %v1244, %v1243
        %v1280 = vpack.c.b16 %v1246, %v1245
        %v1281 = vpack.c.b16 %v1248, %v1247
        %v1282 = vpack.c.b16 %v1250, %v1249
        %v1283 = vpack.c.b16 %v1252, %v1251
        %v1284 = vpack.c.b16 %v1254, %v1253
        %v1285 = vpack.c.b16 %v1256, %v1255
        %v1286 = vpack.c.b16 %v1258, %v1257
        %v1287 = vpack.c.b16 %v1260, %v1259
        %v1288 = vpack.c.b16 %v1262, %v1261
        %v1289 = vpack.c.b16 %v1264, %v1263
        %v1290 = vpack.c.b16 %v1266, %v1265
        %1315 = vmatprep.subr.bf16.mxu0 0
        %1316 = vmatpush1.bf16.msra.mxu0 %v1267
        %1317 = vmatprep.subr.bf16.mxu0 0
        %1318 = vmatpush1.bf16.msra.mxu0 %v1268
        %1319 = vmatprep.subr.bf16.mxu0 0
        %1320 = vmatpush1.bf16.msra.mxu0 %v1269
        %1321 = vmatprep.subr.bf16.mxu0 0
        %1322 = vmatpush1.bf16.msra.mxu0 %v1270
        %1323 = vmatprep.subr.bf16.mxu0 0
        %1324 = vmatpush1.bf16.msra.mxu0 %v1271
        %1325 = vmatprep.subr.bf16.mxu0 0
        %1326 = vmatpush1.bf16.msra.mxu0 %v1272
        %1327 = vmatprep.subr.bf16.mxu0 0
        %1328 = vmatpush1.bf16.msra.mxu0 %v1273
        %1329 = vmatprep.subr.bf16.mxu0 0
        %1330 = vmatpush1.bf16.msra.mxu0 %v1274
        %1331 = vmatprep.subr.bf16.mxu0 0
        %1332 = vmatpush1.bf16.msra.mxu0 %v1275
        %1333 = vmatprep.subr.bf16.mxu0 0
        %1334 = vmatpush1.bf16.msra.mxu0 %v1276
        %1335 = vmatprep.subr.bf16.mxu0 0
        %1336 = vmatpush1.bf16.msra.mxu0 %v1277
        %1337 = vmatprep.subr.bf16.mxu0 0
        %1338 = vmatpush1.bf16.msra.mxu0 %v1278
        %1339 = vmatprep.subr.bf16.mxu0 0
        %1340 = vmatpush1.bf16.msra.mxu0 %v1279
        %1341 = vmatprep.subr.bf16.mxu0 0
        %1342 = vmatpush1.bf16.msra.mxu0 %v1280
        %1343 = vmatprep.subr.bf16.mxu0 0
        %1344 = vmatpush1.bf16.msra.mxu0 %v1281
        %1345 = vmatprep.subr.bf16.mxu0 0
        %1346 = vmatpush1.bf16.msra.mxu0 %v1282
        %1347 = vmatprep.mubr.bf16.mxu0 %v1083
        %1348 = vmatmul.mubr.bf16.gmra.mrb[0].mxu0 %v1082
        %v1349 = vpop.f32.mrb[0].mxu0
        %v1350 = vadd.f32 0.0, %v1349
        %v1351 = vpop.f32.mrb[0].mxu0
        %v1352 = vpop.f32.mrb[0].mxu0
        %v1353 = vadd.f32 0.0, %v1352
        %v1354 = vpop.f32.mrb[0].mxu0
        %1355 = vmatprep.mubr.bf16.mxu0 %v1086
        %1356 = vmatmul.mubr.bf16.gmra.mrb[0].mxu0 %v1085
        %v1357 = vpop.f32.mrb[0].mxu0
        %v1358 = vadd.f32 0.0, %v1357
        %v1359 = vpop.f32.mrb[0].mxu0
        %v1360 = vpop.f32.mrb[0].mxu0
        %v1361 = vadd.f32 0.0, %v1360
        %v1362 = vpop.f32.mrb[0].mxu0
        %1363 = vmatprep.mubr.bf16.mxu0 %v1089
        %1364 = vmatmul.mubr.bf16.gmra.mrb[0].mxu0 %v1088
        %v1365 = vpop.f32.mrb[0].mxu0
        %v1366 = vadd.f32 0.0, %v1365
        %v1367 = vpop.f32.mrb[0].mxu0
        %v1368 = vpop.f32.mrb[0].mxu0
        %v1369 = vadd.f32 0.0, %v1368
        %v1370 = vpop.f32.mrb[0].mxu0
        %1371 = vmatprep.mubr.bf16.mxu0 %v1092
        %1372 = vmatmul.mubr.bf16.gmra.mrb[0].mxu0 %v1091
        %v1373 = vpop.f32.mrb[0].mxu0
        %v1374 = vadd.f32 0.0, %v1373
        %v1375 = vpop.f32.mrb[0].mxu0
        %v1376 = vpop.f32.mrb[0].mxu0
        %v1377 = vadd.f32 0.0, %v1376
        %v1378 = vpop.f32.mrb[0].mxu0
        %1379 = vmatprep.mubr.bf16.mxu0 %v1095
        %1380 = vmatmul.mubr.bf16.gmra.mrb[0].mxu0 %v1094
        %v1381 = vpop.f32.mrb[0].mxu0
        %v1382 = vadd.f32 0.0, %v1381
        %v1383 = vpop.f32.mrb[0].mxu0
        %v1384 = vpop.f32.mrb[0].mxu0
        %v1385 = vadd.f32 0.0, %v1384
        %v1386 = vpop.f32.mrb[0].mxu0
        %1387 = vmatprep.mubr.bf16.mxu0 %v1098
        %1388 = vmatmul.mubr.bf16.gmra.mrb[0].mxu0 %v1097
        %v1389 = vpop.f32.mrb[0].mxu0
        %v1390 = vadd.f32 0.0, %v1389
        %v1391 = vpop.f32.mrb[0].mxu0
        %v1392 = vpop.f32.mrb[0].mxu0
        %v1393 = vadd.f32 0.0, %v1392
        %v1394 = vpop.f32.mrb[0].mxu0
        %1395 = vmatprep.mubr.bf16.mxu0 %v1101
        %1396 = vmatmul.mubr.bf16.gmra.mrb[0].mxu0 %v1100
        %v1397 = vpop.f32.mrb[0].mxu0
        %v1398 = vadd.f32 0.0, %v1397
        %v1399 = vpop.f32.mrb[0].mxu0
        %v1400 = vpop.f32.mrb[0].mxu0
        %v1401 = vadd.f32 0.0, %v1400
        %v1402 = vpop.f32.mrb[0].mxu0
        %1403 = vmatprep.mubr.bf16.mxu0 %v1104
        %1404 = vmatmul.mubr.bf16.gmra.mrb[0].mxu0 %v1103
        %v1405 = vpop.f32.mrb[0].mxu0
        %v1406 = vadd.f32 0.0, %v1405
        %v1407 = vpop.f32.mrb[0].mxu0
        %v1408 = vpop.f32.mrb[0].mxu0
        %v1409 = vadd.f32 0.0, %v1408
        %v1410 = vpop.f32.mrb[0].mxu0
        %1411 = vdwg.mxu0
        %1412 = vmatprep.subr.bf16.mxu0 0
        %1413 = vmatpush1.bf16.msra.mxu0 %v1283
        %1414 = vmatprep.subr.bf16.mxu0 0
        %1415 = vmatpush1.bf16.msra.mxu0 %v1284
        %1416 = vmatprep.subr.bf16.mxu0 0
        %1417 = vmatpush1.bf16.msra.mxu0 %v1285
        %1418 = vmatprep.subr.bf16.mxu0 0
        %1419 = vmatpush1.bf16.msra.mxu0 %v1286
        %1420 = vmatprep.subr.bf16.mxu0 0
        %1421 = vmatpush1.bf16.msra.mxu0 %v1287
        %1422 = vmatprep.subr.bf16.mxu0 0
        %1423 = vmatpush1.bf16.msra.mxu0 %v1288
        %1424 = vmatprep.subr.bf16.mxu0 0
        %1425 = vmatpush1.bf16.msra.mxu0 %v1289
        %1426 = vmatprep.subr.bf16.mxu0 0
        %1427 = vmatpush1.bf16.msra.mxu0 %v1290
        %1428 = vmatprep.subr.bf16.mxu0 0
        %1429 = vmatpush1.bf16.msra.mxu0 0
        %1430 = vmatprep.subr.bf16.mxu0 0
        %1431 = vmatpush1.bf16.msra.mxu0 0
        %1432 = vmatprep.subr.bf16.mxu0 0
        %1433 = vmatpush1.bf16.msra.mxu0 0
        %1434 = vmatprep.subr.bf16.mxu0 0
        %1435 = vmatpush1.bf16.msra.mxu0 0
        %1436 = vmatprep.subr.bf16.mxu0 0
        %1437 = vmatpush1.bf16.msra.mxu0 0
        %1438 = vmatprep.subr.bf16.mxu0 0
        %1439 = vmatpush1.bf16.msra.mxu0 0
        %1440 = vmatprep.subr.bf16.mxu0 0
        %1441 = vmatpush1.bf16.msra.mxu0 0
        %1442 = vmatprep.subr.bf16.mxu0 0
        %1443 = vmatpush1.bf16.msra.mxu0 0
        %1444 = vmatprep.mubr.bf16.mxu0 0
        %1445 = vmatmul.mubr.bf16.gmra.mrb[0].mxu0 %v1084
        %v1446 = vpop.f32.mrb[0].mxu0
        %v1447 = vadd.f32 %v1350, %v1446
        %v1448 = vpop.f32.mrb[0].mxu0
        %v1449 = vpop.f32.mrb[0].mxu0
        %v1450 = vadd.f32 %v1353, %v1449
        %v1451 = vpop.f32.mrb[0].mxu0
        %1452 = vmatprep.mubr.bf16.mxu0 0
        %1453 = vmatmul.mubr.bf16.gmra.mrb[0].mxu0 %v1087
        %v1454 = vpop.f32.mrb[0].mxu0
        %v1455 = vadd.f32 %v1358, %v1454
        %v1456 = vpop.f32.mrb[0].mxu0
        %v1457 = vpop.f32.mrb[0].mxu0
        %v1458 = vadd.f32 %v1361, %v1457
        %v1459 = vpop.f32.mrb[0].mxu0
        %1460 = vmatprep.mubr.bf16.mxu0 0
        %1461 = vmatmul.mubr.bf16.gmra.mrb[0].mxu0 %v1090
        %v1462 = vpop.f32.mrb[0].mxu0
        %v1463 = vadd.f32 %v1366, %v1462
        %v1464 = vpop.f32.mrb[0].mxu0
        %v1465 = vpop.f32.mrb[0].mxu0
        %v1466 = vadd.f32 %v1369, %v1465
        %v1467 = vpop.f32.mrb[0].mxu0
        %1468 = vmatprep.mubr.bf16.mxu0 0
        %1469 = vmatmul.mubr.bf16.gmra.mrb[0].mxu0 %v1093
        %v1470 = vpop.f32.mrb[0].mxu0
        %v1471 = vadd.f32 %v1374, %v1470
        %v1472 = vpop.f32.mrb[0].mxu0
        %v1473 = vpop.f32.mrb[0].mxu0
        %v1474 = vadd.f32 %v1377, %v1473
        %v1475 = vpop.f32.mrb[0].mxu0
        %1476 = vmatprep.mubr.bf16.mxu0 0
        %1477 = vmatmul.mubr.bf16.gmra.mrb[0].mxu0 %v1096
        %v1478 = vpop.f32.mrb[0].mxu0
        %v1479 = vadd.f32 %v1382, %v1478
        %v1480 = vpop.f32.mrb[0].mxu0
        %v1481 = vpop.f32.mrb[0].mxu0
        %v1482 = vadd.f32 %v1385, %v1481
        %v1483 = vpop.f32.mrb[0].mxu0
        %1484 = vmatprep.mubr.bf16.mxu0 0
        %1485 = vmatmul.mubr.bf16.gmra.mrb[0].mxu0 %v1099
        %v1486 = vpop.f32.mrb[0].mxu0
        %v1487 = vadd.f32 %v1390, %v1486
        %v1488 = vpop.f32.mrb[0].mxu0
        %v1489 = vpop.f32.mrb[0].mxu0
        %v1490 = vadd.f32 %v1393, %v1489
        %v1491 = vpop.f32.mrb[0].mxu0
        %1492 = vmatprep.mubr.bf16.mxu0 0
        %1493 = vmatmul.mubr.bf16.gmra.mrb[0].mxu0 %v1102
        %v1494 = vpop.f32.mrb[0].mxu0
        %v1495 = vadd.f32 %v1398, %v1494
        %v1496 = vpop.f32.mrb[0].mxu0
        %v1497 = vpop.f32.mrb[0].mxu0
        %v1498 = vadd.f32 %v1401, %v1497
        %v1499 = vpop.f32.mrb[0].mxu0
        %1500 = vmatprep.mubr.bf16.mxu0 0
        %1501 = vmatmul.mubr.bf16.gmra.mrb[0].mxu0 %v1105
        %v1502 = vpop.f32.mrb[0].mxu0
        %v1503 = vadd.f32 %v1406, %v1502
        %v1504 = vpop.f32.mrb[0].mxu0
        %v1505 = vpop.f32.mrb[0].mxu0
        %v1506 = vadd.f32 %v1409, %v1505
        %v1507 = vpop.f32.mrb[0].mxu0
        %1508 = vdwg.mxu0
        %v1509 = vadd.f32 %v1106, %v1447
        %v1510 = vadd.f32 %v1107, %v1450
        %v1511 = vadd.f32 %v1108, %v1455
        %v1512 = vadd.f32 %v1109, %v1458
        %v1513 = vadd.f32 %v1110, %v1463
        %v1514 = vadd.f32 %v1111, %v1466
        %v1515 = vadd.f32 %v1112, %v1471
        %v1516 = vadd.f32 %v1113, %v1474
        %v1517 = vadd.f32 %v1114, %v1479
        %v1518 = vadd.f32 %v1115, %v1482
        %v1519 = vadd.f32 %v1116, %v1487
        %v1520 = vadd.f32 %v1117, %v1490
        %v1521 = vadd.f32 %v1118, %v1495
        %v1522 = vadd.f32 %v1119, %v1498
        %v1523 = vadd.f32 %v1120, %v1503
        %v1524 = vadd.f32 %v1121, %v1506
        %1525 = vst [vmem:[#allocation3] sm:$0xff] %v1509
        %1526 = vst [vmem:[#allocation3 + $0x8] sm:$0xff] %v1510
        %1527 = vst [vmem:[#allocation3 + $0x10] sm:$0xff] %v1511
        %1528 = vst [vmem:[#allocation3 + $0x18] sm:$0xff] %v1512
        %1529 = vst [vmem:[#allocation3 + $0x20] sm:$0xff] %v1513
        %1530 = vst [vmem:[#allocation3 + $0x28] sm:$0xff] %v1514
        %1531 = vst [vmem:[#allocation3 + $0x30] sm:$0xff] %v1515
        %1532 = vst [vmem:[#allocation3 + $0x38] sm:$0xff] %v1516
        %1533 = vst [vmem:[#allocation3 + $0x40] sm:$0xff] %v1517
        %1534 = vst [vmem:[#allocation3 + $0x48] sm:$0xff] %v1518
        %1535 = vst [vmem:[#allocation3 + $0x50] sm:$0xff] %v1519
        %1536 = vst [vmem:[#allocation3 + $0x58] sm:$0xff] %v1520
        %1537 = vst [vmem:[#allocation3 + $0x60] sm:$0xff] %v1521
        %1538 = vst [vmem:[#allocation3 + $0x68] sm:$0xff] %v1522
        %1539 = vst [vmem:[#allocation3 + $0x70] sm:$0xff] %v1523
        %1540 = vst [vmem:[#allocation3 + $0x78] sm:$0xff] %v1524
        %s1541 = scalar_lea.vmem [#allocation2], 48
        %v1542 = vld [vmem:[%s1541] sm:$0xff]
        %v1543 = vld [vmem:[%s1541 + $0x8] sm:$0xff]
        %v1544 = vld [vmem:[%s1541 + $0x10] sm:$0xff]
        %v1545 = vld [vmem:[%s1541 + $0x18] sm:$0xff]
        %v1546 = vld [vmem:[%s1541 + $0x20] sm:$0xff]
        %v1547 = vld [vmem:[%s1541 + $0x28] sm:$0xff]
        %v1548 = vld [vmem:[%s1541 + $0x30] sm:$0xff]
        %v1549 = vld [vmem:[%s1541 + $0x38] sm:$0xff]
        %v1550 = vld [vmem:[%s1541 + $0x40] sm:$0xff]
        %v1551 = vld [vmem:[%s1541 + $0x48] sm:$0xff]
        %v1552 = vld [vmem:[%s1541 + $0x50] sm:$0xff]
        %v1553 = vld [vmem:[%s1541 + $0x58] sm:$0xff]
        %v1554 = vld [vmem:[%s1541 + $0x60] sm:$0xff]
        %v1555 = vld [vmem:[%s1541 + $0x68] sm:$0xff]
        %v1556 = vld [vmem:[%s1541 + $0x70] sm:$0xff]
        %v1557 = vld [vmem:[%s1541 + $0x78] sm:$0xff]
        %v1558 = vld [vmem:[%s1541 + $0x80] sm:$0xff]
        %v1559 = vld [vmem:[%s1541 + $0x88] sm:$0xff]
        %v1560 = vld [vmem:[%s1541 + $0x90] sm:$0xff]
        %v1561 = vld [vmem:[%s1541 + $0x98] sm:$0xff]
        %v1562 = vld [vmem:[%s1541 + $0xa0] sm:$0xff]
        %v1563 = vld [vmem:[%s1541 + $0xa8] sm:$0xff]
        %v1564 = vld [vmem:[%s1541 + $0xb0] sm:$0xff]
        %v1565 = vld [vmem:[%s1541 + $0xb8] sm:$0xff]
        %v1566 = vld [vmem:[#allocation3] sm:$0xff]
        %v1567 = vld [vmem:[#allocation3 + $0x8] sm:$0xff]
        %v1568 = vld [vmem:[#allocation3 + $0x10] sm:$0xff]
        %v1569 = vld [vmem:[#allocation3 + $0x18] sm:$0xff]
        %v1570 = vld [vmem:[#allocation3 + $0x20] sm:$0xff]
        %v1571 = vld [vmem:[#allocation3 + $0x28] sm:$0xff]
        %v1572 = vld [vmem:[#allocation3 + $0x30] sm:$0xff]
        %v1573 = vld [vmem:[#allocation3 + $0x38] sm:$0xff]
        %v1574 = vld [vmem:[#allocation3 + $0x40] sm:$0xff]
        %v1575 = vld [vmem:[#allocation3 + $0x48] sm:$0xff]
        %v1576 = vld [vmem:[#allocation3 + $0x50] sm:$0xff]
        %v1577 = vld [vmem:[#allocation3 + $0x58] sm:$0xff]
        %v1578 = vld [vmem:[#allocation3 + $0x60] sm:$0xff]
        %v1579 = vld [vmem:[#allocation3 + $0x68] sm:$0xff]
        %v1580 = vld [vmem:[#allocation3 + $0x70] sm:$0xff]
        %v1581 = vld [vmem:[#allocation3 + $0x78] sm:$0xff]
        %s1582 = scalar_lea.vmem [#allocation7], 384
        %v1583 = vld [vmem:[%s1582] sm:$0xf]
        %v1584 = vld [vmem:[%s1582 + $0x4] sm:$0xf]
        %v1585 = vld [vmem:[%s1582 + $0x8] sm:$0xf]
        %v1586 = vld [vmem:[%s1582 + $0xc] sm:$0xf]
        %v1587 = vld [vmem:[%s1582 + $0x10] sm:$0xf]
        %v1588 = vld [vmem:[%s1582 + $0x14] sm:$0xf]
        %v1589 = vld [vmem:[%s1582 + $0x18] sm:$0xf]
        %v1590 = vld [vmem:[%s1582 + $0x1c] sm:$0xf]
        %v1591 = vld [vmem:[%s1582 + $0x20] sm:$0xf]
        %v1592 = vld [vmem:[%s1582 + $0x24] sm:$0xf]
        %v1593 = vld [vmem:[%s1582 + $0x28] sm:$0xf]
        %v1594 = vld [vmem:[%s1582 + $0x2c] sm:$0xf]
        %v1595 = vld [vmem:[%s1582 + $0x30] sm:$0xf]
        %v1596 = vld [vmem:[%s1582 + $0x34] sm:$0xf]
        %v1597 = vld [vmem:[%s1582 + $0x38] sm:$0xf]
        %v1598 = vld [vmem:[%s1582 + $0x3c] sm:$0xf]
        %v1599 = vld [vmem:[%s1582 + $0x40] sm:$0xf]
        %v1600 = vld [vmem:[%s1582 + $0x44] sm:$0xf]
        %v1601 = vld [vmem:[%s1582 + $0x48] sm:$0xf]
        %v1602 = vld [vmem:[%s1582 + $0x4c] sm:$0xf]
        %v1603 = vld [vmem:[%s1582 + $0x50] sm:$0xf]
        %v1604 = vld [vmem:[%s1582 + $0x54] sm:$0xf]
        %v1605 = vld [vmem:[%s1582 + $0x58] sm:$0xf]
        %v1606 = vld [vmem:[%s1582 + $0x5c] sm:$0xf]
        %v1607 = vld [vmem:[%s1582 + $0x60] sm:$0xf]
        %v1608 = vld [vmem:[%s1582 + $0x64] sm:$0xf]
        %v1609 = vld [vmem:[%s1582 + $0x68] sm:$0xf]
        %v1610 = vld [vmem:[%s1582 + $0x6c] sm:$0xf]
        %v1611 = vld [vmem:[%s1582 + $0x70] sm:$0xf]
        %v1612 = vld [vmem:[%s1582 + $0x74] sm:$0xf]
        %v1613 = vld [vmem:[%s1582 + $0x78] sm:$0xf]
        %v1614 = vld [vmem:[%s1582 + $0x7c] sm:$0xf]
        %v1615 = vld [vmem:[%s1582 + $0x80] sm:$0xf]
        %v1616 = vld [vmem:[%s1582 + $0x84] sm:$0xf]
        %v1617 = vld [vmem:[%s1582 + $0x88] sm:$0xf]
        %v1618 = vld [vmem:[%s1582 + $0x8c] sm:$0xf]
        %v1619 = vld [vmem:[%s1582 + $0x90] sm:$0xf]
        %v1620 = vld [vmem:[%s1582 + $0x94] sm:$0xf]
        %v1621 = vld [vmem:[%s1582 + $0x98] sm:$0xf]
        %v1622 = vld [vmem:[%s1582 + $0x9c] sm:$0xf]
        %v1623 = vld [vmem:[%s1582 + $0xa0] sm:$0xf]
        %v1624 = vld [vmem:[%s1582 + $0xa4] sm:$0xf]
        %v1625 = vld [vmem:[%s1582 + $0xa8] sm:$0xf]
        %v1626 = vld [vmem:[%s1582 + $0xac] sm:$0xf]
        %v1627 = vld [vmem:[%s1582 + $0xb0] sm:$0xf]
        %v1628 = vld [vmem:[%s1582 + $0xb4] sm:$0xf]
        %v1629 = vld [vmem:[%s1582 + $0xb8] sm:$0xf]
        %v1630 = vld [vmem:[%s1582 + $0xbc] sm:$0xf]
        %v1679 = vunpack.c.l.b16 %v1583
        %v1680 = vunpack.c.l.b16 %v1584
        %v1681 = vunpack.c.l.b16 %v1585
        %v1682 = vunpack.c.l.b16 %v1586
        %v1683 = vunpack.c.l.b16 %v1587
        %v1684 = vunpack.c.l.b16 %v1588
        %v1685 = vunpack.c.l.b16 %v1589
        %v1686 = vunpack.c.l.b16 %v1590
        %v1687 = vunpack.c.l.b16 %v1591
        %v1688 = vunpack.c.l.b16 %v1592
        %v1689 = vunpack.c.l.b16 %v1593
        %v1690 = vunpack.c.l.b16 %v1594
        %v1691 = vunpack.c.l.b16 %v1595
        %v1692 = vunpack.c.l.b16 %v1596
        %v1693 = vunpack.c.l.b16 %v1597
        %v1694 = vunpack.c.l.b16 %v1598
        %v1695 = vunpack.c.l.b16 %v1599
        %v1696 = vunpack.c.l.b16 %v1600
        %v1697 = vunpack.c.l.b16 %v1601
        %v1698 = vunpack.c.l.b16 %v1602
        %v1699 = vunpack.c.l.b16 %v1603
        %v1700 = vunpack.c.l.b16 %v1604
        %v1701 = vunpack.c.l.b16 %v1605
        %v1702 = vunpack.c.l.b16 %v1606
        %v1703 = vunpack.c.l.b16 %v1607
        %v1704 = vunpack.c.l.b16 %v1608
        %v1705 = vunpack.c.l.b16 %v1609
        %v1706 = vunpack.c.l.b16 %v1610
        %v1707 = vunpack.c.l.b16 %v1611
        %v1708 = vunpack.c.l.b16 %v1612
        %v1709 = vunpack.c.l.b16 %v1613
        %v1710 = vunpack.c.l.b16 %v1614
        %v1711 = vunpack.c.l.b16 %v1615
        %v1712 = vunpack.c.l.b16 %v1616
        %v1713 = vunpack.c.l.b16 %v1617
        %v1714 = vunpack.c.l.b16 %v1618
        %v1715 = vunpack.c.l.b16 %v1619
        %v1716 = vunpack.c.l.b16 %v1620
        %v1717 = vunpack.c.l.b16 %v1621
        %v1718 = vunpack.c.l.b16 %v1622
        %v1719 = vunpack.c.l.b16 %v1623
        %v1720 = vunpack.c.l.b16 %v1624
        %v1721 = vunpack.c.l.b16 %v1625
        %v1722 = vunpack.c.l.b16 %v1626
        %v1723 = vunpack.c.l.b16 %v1627
        %v1724 = vunpack.c.l.b16 %v1628
        %v1725 = vunpack.c.l.b16 %v1629
        %v1726 = vunpack.c.l.b16 %v1630
        %v1727 = vpack.c.b16 %v1680, %v1679
        %v1728 = vpack.c.b16 %v1682, %v1681
        %v1729 = vpack.c.b16 %v1684, %v1683
        %v1730 = vpack.c.b16 %v1686, %v1685
        %v1731 = vpack.c.b16 %v1688, %v1687
        %v1732 = vpack.c.b16 %v1690, %v1689
        %v1733 = vpack.c.b16 %v1692, %v1691
        %v1734 = vpack.c.b16 %v1694, %v1693
        %v1735 = vpack.c.b16 %v1696, %v1695
        %v1736 = vpack.c.b16 %v1698, %v1697
        %v1737 = vpack.c.b16 %v1700, %v1699
        %v1738 = vpack.c.b16 %v1702, %v1701
        %v1739 = vpack.c.b16 %v1704, %v1703
        %v1740 = vpack.c.b16 %v1706, %v1705
        %v1741 = vpack.c.b16 %v1708, %v1707
        %v1742 = vpack.c.b16 %v1710, %v1709
        %v1743 = vpack.c.b16 %v1712, %v1711
        %v1744 = vpack.c.b16 %v1714, %v1713
        %v1745 = vpack.c.b16 %v1716, %v1715
        %v1746 = vpack.c.b16 %v1718, %v1717
        %v1747 = vpack.c.b16 %v1720, %v1719
        %v1748 = vpack.c.b16 %v1722, %v1721
        %v1749 = vpack.c.b16 %v1724, %v1723
        %v1750 = vpack.c.b16 %v1726, %v1725
        %1775 = vmatprep.subr.bf16.mxu0 0
        %1776 = vmatpush1.bf16.msra.mxu0 %v1727
        %1777 = vmatprep.subr.bf16.mxu0 0
        %1778 = vmatpush1.bf16.msra.mxu0 %v1728
        %1779 = vmatprep.subr.bf16.mxu0 0
        %1780 = vmatpush1.bf16.msra.mxu0 %v1729
        %1781 = vmatprep.subr.bf16.mxu0 0
        %1782 = vmatpush1.bf16.msra.mxu0 %v1730
        %1783 = vmatprep.subr.bf16.mxu0 0
        %1784 = vmatpush1.bf16.msra.mxu0 %v1731
        %1785 = vmatprep.subr.bf16.mxu0 0
        %1786 = vmatpush1.bf16.msra.mxu0 %v1732
        %1787 = vmatprep.subr.bf16.mxu0 0
        %1788 = vmatpush1.bf16.msra.mxu0 %v1733
        %1789 = vmatprep.subr.bf16.mxu0 0
        %1790 = vmatpush1.bf16.msra.mxu0 %v1734
        %1791 = vmatprep.subr.bf16.mxu0 0
        %1792 = vmatpush1.bf16.msra.mxu0 %v1735
        %1793 = vmatprep.subr.bf16.mxu0 0
        %1794 = vmatpush1.bf16.msra.mxu0 %v1736
        %1795 = vmatprep.subr.bf16.mxu0 0
        %1796 = vmatpush1.bf16.msra.mxu0 %v1737
        %1797 = vmatprep.subr.bf16.mxu0 0
        %1798 = vmatpush1.bf16.msra.mxu0 %v1738
        %1799 = vmatprep.subr.bf16.mxu0 0
        %1800 = vmatpush1.bf16.msra.mxu0 %v1739
        %1801 = vmatprep.subr.bf16.mxu0 0
        %1802 = vmatpush1.bf16.msra.mxu0 %v1740
        %1803 = vmatprep.subr.bf16.mxu0 0
        %1804 = vmatpush1.bf16.msra.mxu0 %v1741
        %1805 = vmatprep.subr.bf16.mxu0 0
        %1806 = vmatpush1.bf16.msra.mxu0 %v1742
        %1807 = vmatprep.mubr.bf16.mxu0 %v1543
        %1808 = vmatmul.mubr.bf16.gmra.mrb[0].mxu0 %v1542
        %v1809 = vpop.f32.mrb[0].mxu0
        %v1810 = vadd.f32 0.0, %v1809
        %v1811 = vpop.f32.mrb[0].mxu0
        %v1812 = vpop.f32.mrb[0].mxu0
        %v1813 = vadd.f32 0.0, %v1812
        %v1814 = vpop.f32.mrb[0].mxu0
        %1815 = vmatprep.mubr.bf16.mxu0 %v1546
        %1816 = vmatmul.mubr.bf16.gmra.mrb[0].mxu0 %v1545
        %v1817 = vpop.f32.mrb[0].mxu0
        %v1818 = vadd.f32 0.0, %v1817
        %v1819 = vpop.f32.mrb[0].mxu0
        %v1820 = vpop.f32.mrb[0].mxu0
        %v1821 = vadd.f32 0.0, %v1820
        %v1822 = vpop.f32.mrb[0].mxu0
        %1823 = vmatprep.mubr.bf16.mxu0 %v1549
        %1824 = vmatmul.mubr.bf16.gmra.mrb[0].mxu0 %v1548
        %v1825 = vpop.f32.mrb[0].mxu0
        %v1826 = vadd.f32 0.0, %v1825
        %v1827 = vpop.f32.mrb[0].mxu0
        %v1828 = vpop.f32.mrb[0].mxu0
        %v1829 = vadd.f32 0.0, %v1828
        %v1830 = vpop.f32.mrb[0].mxu0
        %1831 = vmatprep.mubr.bf16.mxu0 %v1552
        %1832 = vmatmul.mubr.bf16.gmra.mrb[0].mxu0 %v1551
        %v1833 = vpop.f32.mrb[0].mxu0
        %v1834 = vadd.f32 0.0, %v1833
        %v1835 = vpop.f32.mrb[0].mxu0
        %v1836 = vpop.f32.mrb[0].mxu0
        %v1837 = vadd.f32 0.0, %v1836
        %v1838 = vpop.f32.mrb[0].mxu0
        %1839 = vmatprep.mubr.bf16.mxu0 %v1555
        %1840 = vmatmul.mubr.bf16.gmra.mrb[0].mxu0 %v1554
        %v1841 = vpop.f32.mrb[0].mxu0
        %v1842 = vadd.f32 0.0, %v1841
        %v1843 = vpop.f32.mrb[0].mxu0
        %v1844 = vpop.f32.mrb[0].mxu0
        %v1845 = vadd.f32 0.0, %v1844
        %v1846 = vpop.f32.mrb[0].mxu0
        %1847 = vmatprep.mubr.bf16.mxu0 %v1558
        %1848 = vmatmul.mubr.bf16.gmra.mrb[0].mxu0 %v1557
        %v1849 = vpop.f32.mrb[0].mxu0
        %v1850 = vadd.f32 0.0, %v1849
        %v1851 = vpop.f32.mrb[0].mxu0
        %v1852 = vpop.f32.mrb[0].mxu0
        %v1853 = vadd.f32 0.0, %v1852
        %v1854 = vpop.f32.mrb[0].mxu0
        %1855 = vmatprep.mubr.bf16.mxu0 %v1561
        %1856 = vmatmul.mubr.bf16.gmra.mrb[0].mxu0 %v1560
        %v1857 = vpop.f32.mrb[0].mxu0
        %v1858 = vadd.f32 0.0, %v1857
        %v1859 = vpop.f32.mrb[0].mxu0
        %v1860 = vpop.f32.mrb[0].mxu0
        %v1861 = vadd.f32 0.0, %v1860
        %v1862 = vpop.f32.mrb[0].mxu0
        %1863 = vmatprep.mubr.bf16.mxu0 %v1564
        %1864 = vmatmul.mubr.bf16.gmra.mrb[0].mxu0 %v1563
        %v1865 = vpop.f32.mrb[0].mxu0
        %v1866 = vadd.f32 0.0, %v1865
        %v1867 = vpop.f32.mrb[0].mxu0
        %v1868 = vpop.f32.mrb[0].mxu0
        %v1869 = vadd.f32 0.0, %v1868
        %v1870 = vpop.f32.mrb[0].mxu0
        %1871 = vdwg.mxu0
        %1872 = vmatprep.subr.bf16.mxu0 0
        %1873 = vmatpush1.bf16.msra.mxu0 %v1743
        %1874 = vmatprep.subr.bf16.mxu0 0
        %1875 = vmatpush1.bf16.msra.mxu0 %v1744
        %1876 = vmatprep.subr.bf16.mxu0 0
        %1877 = vmatpush1.bf16.msra.mxu0 %v1745
        %1878 = vmatprep.subr.bf16.mxu0 0
        %1879 = vmatpush1.bf16.msra.mxu0 %v1746
        %1880 = vmatprep.subr.bf16.mxu0 0
        %1881 = vmatpush1.bf16.msra.mxu0 %v1747
        %1882 = vmatprep.subr.bf16.mxu0 0
        %1883 = vmatpush1.bf16.msra.mxu0 %v1748
        %1884 = vmatprep.subr.bf16.mxu0 0
        %1885 = vmatpush1.bf16.msra.mxu0 %v1749
        %1886 = vmatprep.subr.bf16.mxu0 0
        %1887 = vmatpush1.bf16.msra.mxu0 %v1750
        %1888 = vmatprep.subr.bf16.mxu0 0
        %1889 = vmatpush1.bf16.msra.mxu0 0
        %1890 = vmatprep.subr.bf16.mxu0 0
        %1891 = vmatpush1.bf16.msra.mxu0 0
        %1892 = vmatprep.subr.bf16.mxu0 0
        %1893 = vmatpush1.bf16.msra.mxu0 0
        %1894 = vmatprep.subr.bf16.mxu0 0
        %1895 = vmatpush1.bf16.msra.mxu0 0
        %1896 = vmatprep.subr.bf16.mxu0 0
        %1897 = vmatpush1.bf16.msra.mxu0 0
        %1898 = vmatprep.subr.bf16.mxu0 0
        %1899 = vmatpush1.bf16.msra.mxu0 0
        %1900 = vmatprep.subr.bf16.mxu0 0
        %1901 = vmatpush1.bf16.msra.mxu0 0
        %1902 = vmatprep.subr.bf16.mxu0 0
        %1903 = vmatpush1.bf16.msra.mxu0 0
        %1904 = vmatprep.mubr.bf16.mxu0 0
        %1905 = vmatmul.mubr.bf16.gmra.mrb[0].mxu0 %v1544
        %v1906 = vpop.f32.mrb[0].mxu0
        %v1907 = vadd.f32 %v1810, %v1906
        %v1908 = vpop.f32.mrb[0].mxu0
        %v1909 = vpop.f32.mrb[0].mxu0
        %v1910 = vadd.f32 %v1813, %v1909
        %v1911 = vpop.f32.mrb[0].mxu0
        %1912 = vmatprep.mubr.bf16.mxu0 0
        %1913 = vmatmul.mubr.bf16.gmra.mrb[0].mxu0 %v1547
        %v1914 = vpop.f32.mrb[0].mxu0
        %v1915 = vadd.f32 %v1818, %v1914
        %v1916 = vpop.f32.mrb[0].mxu0
        %v1917 = vpop.f32.mrb[0].mxu0
        %v1918 = vadd.f32 %v1821, %v1917
        %v1919 = vpop.f32.mrb[0].mxu0
        %1920 = vmatprep.mubr.bf16.mxu0 0
        %1921 = vmatmul.mubr.bf16.gmra.mrb[0].mxu0 %v1550
        %v1922 = vpop.f32.mrb[0].mxu0
        %v1923 = vadd.f32 %v1826, %v1922
        %v1924 = vpop.f32.mrb[0].mxu0
        %v1925 = vpop.f32.mrb[0].mxu0
        %v1926 = vadd.f32 %v1829, %v1925
        %v1927 = vpop.f32.mrb[0].mxu0
        %1928 = vmatprep.mubr.bf16.mxu0 0
        %1929 = vmatmul.mubr.bf16.gmra.mrb[0].mxu0 %v1553
        %v1930 = vpop.f32.mrb[0].mxu0
        %v1931 = vadd.f32 %v1834, %v1930
        %v1932 = vpop.f32.mrb[0].mxu0
        %v1933 = vpop.f32.mrb[0].mxu0
        %v1934 = vadd.f32 %v1837, %v1933
        %v1935 = vpop.f32.mrb[0].mxu0
        %1936 = vmatprep.mubr.bf16.mxu0 0
        %1937 = vmatmul.mubr.bf16.gmra.mrb[0].mxu0 %v1556
        %v1938 = vpop.f32.mrb[0].mxu0
        %v1939 = vadd.f32 %v1842, %v1938
        %v1940 = vpop.f32.mrb[0].mxu0
        %v1941 = vpop.f32.mrb[0].mxu0
        %v1942 = vadd.f32 %v1845, %v1941
        %v1943 = vpop.f32.mrb[0].mxu0
        %1944 = vmatprep.mubr.bf16.mxu0 0
        %1945 = vmatmul.mubr.bf16.gmra.mrb[0].mxu0 %v1559
        %v1946 = vpop.f32.mrb[0].mxu0
        %v1947 = vadd.f32 %v1850, %v1946
        %v1948 = vpop.f32.mrb[0].mxu0
        %v1949 = vpop.f32.mrb[0].mxu0
        %v1950 = vadd.f32 %v1853, %v1949
        %v1951 = vpop.f32.mrb[0].mxu0
        %1952 = vmatprep.mubr.bf16.mxu0 0
        %1953 = vmatmul.mubr.bf16.gmra.mrb[0].mxu0 %v1562
        %v1954 = vpop.f32.mrb[0].mxu0
        %v1955 = vadd.f32 %v1858, %v1954
        %v1956 = vpop.f32.mrb[0].mxu0
        %v1957 = vpop.f32.mrb[0].mxu0
        %v1958 = vadd.f32 %v1861, %v1957
        %v1959 = vpop.f32.mrb[0].mxu0
        %1960 = vmatprep.mubr.bf16.mxu0 0
        %1961 = vmatmul.mubr.bf16.gmra.mrb[0].mxu0 %v1565
        %v1962 = vpop.f32.mrb[0].mxu0
        %v1963 = vadd.f32 %v1866, %v1962
        %v1964 = vpop.f32.mrb[0].mxu0
        %v1965 = vpop.f32.mrb[0].mxu0
        %v1966 = vadd.f32 %v1869, %v1965
        %v1967 = vpop.f32.mrb[0].mxu0
        %1968 = vdwg.mxu0
        %v1969 = vadd.f32 %v1566, %v1907
        %v1970 = vadd.f32 %v1567, %v1910
        %v1971 = vadd.f32 %v1568, %v1915
        %v1972 = vadd.f32 %v1569, %v1918
        %v1973 = vadd.f32 %v1570, %v1923
        %v1974 = vadd.f32 %v1571, %v1926
        %v1975 = vadd.f32 %v1572, %v1931
        %v1976 = vadd.f32 %v1573, %v1934
        %v1977 = vadd.f32 %v1574, %v1939
        %v1978 = vadd.f32 %v1575, %v1942
        %v1979 = vadd.f32 %v1576, %v1947
        %v1980 = vadd.f32 %v1577, %v1950
        %v1981 = vadd.f32 %v1578, %v1955
        %v1982 = vadd.f32 %v1579, %v1958
        %v1983 = vadd.f32 %v1580, %v1963
        %v1984 = vadd.f32 %v1581, %v1966
        %1985 = vst [vmem:[#allocation3] sm:$0xff] %v1969
        %1986 = vst [vmem:[#allocation3 + $0x8] sm:$0xff] %v1970
        %1987 = vst [vmem:[#allocation3 + $0x10] sm:$0xff] %v1971
        %1988 = vst [vmem:[#allocation3 + $0x18] sm:$0xff] %v1972
        %1989 = vst [vmem:[#allocation3 + $0x20] sm:$0xff] %v1973
        %1990 = vst [vmem:[#allocation3 + $0x28] sm:$0xff] %v1974
        %1991 = vst [vmem:[#allocation3 + $0x30] sm:$0xff] %v1975
        %1992 = vst [vmem:[#allocation3 + $0x38] sm:$0xff] %v1976
        %1993 = vst [vmem:[#allocation3 + $0x40] sm:$0xff] %v1977
        %1994 = vst [vmem:[#allocation3 + $0x48] sm:$0xff] %v1978
        %1995 = vst [vmem:[#allocation3 + $0x50] sm:$0xff] %v1979
        %1996 = vst [vmem:[#allocation3 + $0x58] sm:$0xff] %v1980
        %1997 = vst [vmem:[#allocation3 + $0x60] sm:$0xff] %v1981
        %1998 = vst [vmem:[#allocation3 + $0x68] sm:$0xff] %v1982
        %1999 = vst [vmem:[#allocation3 + $0x70] sm:$0xff] %v1983
        %2000 = vst [vmem:[#allocation3 + $0x78] sm:$0xff] %v1984
        %v2001 = vld [vmem:[#allocation3] sm:$0xff]
        %v2002 = vld [vmem:[#allocation3 + $0x8] sm:$0xff]
        %v2003 = vld [vmem:[#allocation3 + $0x10] sm:$0xff]
        %v2004 = vld [vmem:[#allocation3 + $0x18] sm:$0xff]
        %v2005 = vld [vmem:[#allocation3 + $0x20] sm:$0xff]
        %v2006 = vld [vmem:[#allocation3 + $0x28] sm:$0xff]
        %v2007 = vld [vmem:[#allocation3 + $0x30] sm:$0xff]
        %v2008 = vld [vmem:[#allocation3 + $0x38] sm:$0xff]
        %v2009 = vld [vmem:[#allocation3 + $0x40] sm:$0xff]
        %v2010 = vld [vmem:[#allocation3 + $0x48] sm:$0xff]
        %v2011 = vld [vmem:[#allocation3 + $0x50] sm:$0xff]
        %v2012 = vld [vmem:[#allocation3 + $0x58] sm:$0xff]
        %v2013 = vld [vmem:[#allocation3 + $0x60] sm:$0xff]
        %v2014 = vld [vmem:[#allocation3 + $0x68] sm:$0xff]
        %v2015 = vld [vmem:[#allocation3 + $0x70] sm:$0xff]
        %v2016 = vld [vmem:[#allocation3 + $0x78] sm:$0xff]
        %v2017 = vld [vmem:[%s2] sm:$0x1]
        %v2019 = vlaneseq
        %v2020 = vshrl.u32 %v2019, 7
        %v2021 = vsub.s32 0, %v2020
        %v2022 = vrot.slane %v2017, %v2021
        %v2024 = vadd.f32 %v2001, %v2022
        %v2025 = vadd.f32 %v2002, %v2022
        %v2026 = vadd.f32 %v2003, %v2022
        %v2027 = vadd.f32 %v2004, %v2022
        %v2028 = vadd.f32 %v2005, %v2022
        %v2029 = vadd.f32 %v2006, %v2022
        %v2030 = vadd.f32 %v2007, %v2022
        %v2031 = vadd.f32 %v2008, %v2022
        %v2032 = vadd.f32 %v2009, %v2022
        %v2033 = vadd.f32 %v2010, %v2022
        %v2034 = vadd.f32 %v2011, %v2022
        %v2035 = vadd.f32 %v2012, %v2022
        %v2036 = vadd.f32 %v2013, %v2022
        %v2037 = vadd.f32 %v2014, %v2022
        %v2038 = vadd.f32 %v2015, %v2022
        %v2039 = vadd.f32 %v2016, %v2022
        %vm2040 = vcmp.gt.f32.partialorder %v2024, 0.0
        %vm2041 = vcmp.gt.f32.partialorder %v2025, 0.0
        %vm2042 = vcmp.gt.f32.partialorder %v2026, 0.0
        %vm2043 = vcmp.gt.f32.partialorder %v2027, 0.0
        %vm2044 = vcmp.gt.f32.partialorder %v2028, 0.0
        %vm2045 = vcmp.gt.f32.partialorder %v2029, 0.0
        %vm2046 = vcmp.gt.f32.partialorder %v2030, 0.0
        %vm2047 = vcmp.gt.f32.partialorder %v2031, 0.0
        %vm2048 = vcmp.gt.f32.partialorder %v2032, 0.0
        %vm2049 = vcmp.gt.f32.partialorder %v2033, 0.0
        %vm2050 = vcmp.gt.f32.partialorder %v2034, 0.0
        %vm2051 = vcmp.gt.f32.partialorder %v2035, 0.0
        %vm2052 = vcmp.gt.f32.partialorder %v2036, 0.0
        %vm2053 = vcmp.gt.f32.partialorder %v2037, 0.0
        %vm2054 = vcmp.gt.f32.partialorder %v2038, 0.0
        %vm2055 = vcmp.gt.f32.partialorder %v2039, 0.0
        %v2056 = vmul.f32 %v2024, 0.1
        %v2057 = vmul.f32 %v2025, 0.1
        %v2058 = vmul.f32 %v2026, 0.1
        %v2059 = vmul.f32 %v2027, 0.1
        %v2060 = vmul.f32 %v2028, 0.1
        %v2061 = vmul.f32 %v2029, 0.1
        %v2062 = vmul.f32 %v2030, 0.1
        %v2063 = vmul.f32 %v2031, 0.1
        %v2064 = vmul.f32 %v2032, 0.1
        %v2065 = vmul.f32 %v2033, 0.1
        %v2066 = vmul.f32 %v2034, 0.1
        %v2067 = vmul.f32 %v2035, 0.1
        %v2068 = vmul.f32 %v2036, 0.1
        %v2069 = vmul.f32 %v2037, 0.1
        %v2070 = vmul.f32 %v2038, 0.1
        %v2071 = vmul.f32 %v2039, 0.1
        %v2072 = vsel %vm2040, %v2024, %v2056
        %v2073 = vsel %vm2041, %v2025, %v2057
        %v2074 = vsel %vm2042, %v2026, %v2058
        %v2075 = vsel %vm2043, %v2027, %v2059
        %v2076 = vsel %vm2044, %v2028, %v2060
        %v2077 = vsel %vm2045, %v2029, %v2061
        %v2078 = vsel %vm2046, %v2030, %v2062
        %v2079 = vsel %vm2047, %v2031, %v2063
        %v2080 = vsel %vm2048, %v2032, %v2064
        %v2081 = vsel %vm2049, %v2033, %v2065
        %v2082 = vsel %vm2050, %v2034, %v2066
        %v2083 = vsel %vm2051, %v2035, %v2067
        %v2084 = vsel %vm2052, %v2036, %v2068
        %v2085 = vsel %vm2053, %v2037, %v2069
        %v2086 = vsel %vm2054, %v2038, %v2070
        %v2087 = vsel %vm2055, %v2039, %v2071
        %v2088 = vpack.c.bf16 %v2073, %v2072
        %v2089 = vpack.c.bf16 %v2075, %v2074
        %v2090 = vpack.c.bf16 %v2077, %v2076
        %v2091 = vpack.c.bf16 %v2079, %v2078
        %v2092 = vpack.c.bf16 %v2081, %v2080
        %v2093 = vpack.c.bf16 %v2083, %v2082
        %v2094 = vpack.c.bf16 %v2085, %v2084
        %v2095 = vpack.c.bf16 %v2087, %v2086
        %v2096 = vld [vmem:[#allocation9] sm:$0xf]
        %v2097 = vld [vmem:[#allocation9 + $0x4] sm:$0xf]
        %v2098 = vld [vmem:[#allocation9 + $0x8] sm:$0xf]
        %v2099 = vld [vmem:[#allocation9 + $0xc] sm:$0xf]
        %v2100 = vld [vmem:[#allocation9 + $0x10] sm:$0xf]
        %v2101 = vld [vmem:[#allocation9 + $0x14] sm:$0xf]
        %v2102 = vld [vmem:[#allocation9 + $0x18] sm:$0xf]
        %v2103 = vld [vmem:[#allocation9 + $0x1c] sm:$0xf]
        %v2104 = vld [vmem:[#allocation9 + $0x20] sm:$0xf]
        %v2105 = vld [vmem:[#allocation9 + $0x24] sm:$0xf]
        %v2106 = vld [vmem:[#allocation9 + $0x28] sm:$0xf]
        %v2107 = vld [vmem:[#allocation9 + $0x2c] sm:$0xf]
        %v2108 = vld [vmem:[#allocation9 + $0x30] sm:$0xf]
        %v2109 = vld [vmem:[#allocation9 + $0x34] sm:$0xf]
        %v2110 = vld [vmem:[#allocation9 + $0x38] sm:$0xf]
        %v2111 = vld [vmem:[#allocation9 + $0x3c] sm:$0xf]
        %v2112 = vld [vmem:[%s4] sm:$0x1]
        %v2114 = vlaneseq
        %v2115 = vshrl.u32 %v2114, 7
        %v2116 = vsub.s32 0, %v2115
        %v2117 = vrot.slane %v2112, %v2116
        %v2135 = vunpack.c.l.b16 %v2096
        %v2136 = vunpack.c.l.b16 %v2097
        %v2137 = vunpack.c.l.b16 %v2098
        %v2138 = vunpack.c.l.b16 %v2099
        %v2139 = vunpack.c.l.b16 %v2100
        %v2140 = vunpack.c.l.b16 %v2101
        %v2141 = vunpack.c.l.b16 %v2102
        %v2142 = vunpack.c.l.b16 %v2103
        %v2143 = vunpack.c.l.b16 %v2104
        %v2144 = vunpack.c.l.b16 %v2105
        %v2145 = vunpack.c.l.b16 %v2106
        %v2146 = vunpack.c.l.b16 %v2107
        %v2147 = vunpack.c.l.b16 %v2108
        %v2148 = vunpack.c.l.b16 %v2109
        %v2149 = vunpack.c.l.b16 %v2110
        %v2150 = vunpack.c.l.b16 %v2111
        %v2151 = vpack.c.b16 %v2136, %v2135
        %v2152 = vpack.c.b16 %v2138, %v2137
        %v2153 = vpack.c.b16 %v2140, %v2139
        %v2154 = vpack.c.b16 %v2142, %v2141
        %v2155 = vpack.c.b16 %v2144, %v2143
        %v2156 = vpack.c.b16 %v2146, %v2145
        %v2157 = vpack.c.b16 %v2148, %v2147
        %v2158 = vpack.c.b16 %v2150, %v2149
        %2167 = vmatprep.subr.bf16.mxu0 0
        %2168 = vmatpush1.bf16.msra.mxu0 %v2151
        %2169 = vmatprep.subr.bf16.mxu0 0
        %2170 = vmatpush1.bf16.msra.mxu0 %v2152
        %2171 = vmatprep.subr.bf16.mxu0 0
        %2172 = vmatpush1.bf16.msra.mxu0 %v2153
        %2173 = vmatprep.subr.bf16.mxu0 0
        %2174 = vmatpush1.bf16.msra.mxu0 %v2154
        %2175 = vmatprep.subr.bf16.mxu0 0
        %2176 = vmatpush1.bf16.msra.mxu0 %v2155
        %2177 = vmatprep.subr.bf16.mxu0 0
        %2178 = vmatpush1.bf16.msra.mxu0 %v2156
        %2179 = vmatprep.subr.bf16.mxu0 0
        %2180 = vmatpush1.bf16.msra.mxu0 %v2157
        %2181 = vmatprep.subr.bf16.mxu0 0
        %2182 = vmatpush1.bf16.msra.mxu0 %v2158
        %2183 = vmatprep.subr.bf16.mxu0 0
        %2184 = vmatpush1.bf16.msra.mxu0 0
        %2185 = vmatprep.subr.bf16.mxu0 0
        %2186 = vmatpush1.bf16.msra.mxu0 0
        %2187 = vmatprep.subr.bf16.mxu0 0
        %2188 = vmatpush1.bf16.msra.mxu0 0
        %2189 = vmatprep.subr.bf16.mxu0 0
        %2190 = vmatpush1.bf16.msra.mxu0 0
        %2191 = vmatprep.subr.bf16.mxu0 0
        %2192 = vmatpush1.bf16.msra.mxu0 0
        %2193 = vmatprep.subr.bf16.mxu0 0
        %2194 = vmatpush1.bf16.msra.mxu0 0
        %2195 = vmatprep.subr.bf16.mxu0 0
        %2196 = vmatpush1.bf16.msra.mxu0 0
        %2197 = vmatprep.subr.bf16.mxu0 0
        %2198 = vmatpush1.bf16.msra.mxu0 0
        %2199 = vmatprep.mubr.bf16.mxu0 0
        %2200 = vmatmul.mubr.bf16.gmra.mrb[0].mxu0 %v2088
        %v2201 = vpop.f32.mrb[0].mxu0
        %v2202 = vadd.f32 %v2117, %v2201
        %v2203 = vpop.f32.mrb[0].mxu0
        %v2204 = vpop.f32.mrb[0].mxu0
        %v2205 = vadd.f32 %v2117, %v2204
        %v2206 = vpop.f32.mrb[0].mxu0
        %2207 = vmatprep.mubr.bf16.mxu0 0
        %2208 = vmatmul.mubr.bf16.gmra.mrb[0].mxu0 %v2089
        %v2209 = vpop.f32.mrb[0].mxu0
        %v2210 = vadd.f32 %v2117, %v2209
        %v2211 = vpop.f32.mrb[0].mxu0
        %v2212 = vpop.f32.mrb[0].mxu0
        %v2213 = vadd.f32 %v2117, %v2212
        %v2214 = vpop.f32.mrb[0].mxu0
        %2215 = vmatprep.mubr.bf16.mxu0 0
        %2216 = vmatmul.mubr.bf16.gmra.mrb[0].mxu0 %v2090
        %v2217 = vpop.f32.mrb[0].mxu0
        %v2218 = vadd.f32 %v2117, %v2217
        %v2219 = vpop.f32.mrb[0].mxu0
        %v2220 = vpop.f32.mrb[0].mxu0
        %v2221 = vadd.f32 %v2117, %v2220
        %v2222 = vpop.f32.mrb[0].mxu0
        %2223 = vmatprep.mubr.bf16.mxu0 0
        %2224 = vmatmul.mubr.bf16.gmra.mrb[0].mxu0 %v2091
        %v2225 = vpop.f32.mrb[0].mxu0
        %v2226 = vadd.f32 %v2117, %v2225
        %v2227 = vpop.f32.mrb[0].mxu0
        %v2228 = vpop.f32.mrb[0].mxu0
        %v2229 = vadd.f32 %v2117, %v2228
        %v2230 = vpop.f32.mrb[0].mxu0
        %2231 = vmatprep.mubr.bf16.mxu0 0
        %2232 = vmatmul.mubr.bf16.gmra.mrb[0].mxu0 %v2092
        %v2233 = vpop.f32.mrb[0].mxu0
        %v2234 = vadd.f32 %v2117, %v2233
        %v2235 = vpop.f32.mrb[0].mxu0
        %v2236 = vpop.f32.mrb[0].mxu0
        %v2237 = vadd.f32 %v2117, %v2236
        %v2238 = vpop.f32.mrb[0].mxu0
        %2239 = vmatprep.mubr.bf16.mxu0 0
        %2240 = vmatmul.mubr.bf16.gmra.mrb[0].mxu0 %v2093
        %v2241 = vpop.f32.mrb[0].mxu0
        %v2242 = vadd.f32 %v2117, %v2241
        %v2243 = vpop.f32.mrb[0].mxu0
        %v2244 = vpop.f32.mrb[0].mxu0
        %v2245 = vadd.f32 %v2117, %v2244
        %v2246 = vpop.f32.mrb[0].mxu0
        %2247 = vmatprep.mubr.bf16.mxu0 0
        %2248 = vmatmul.mubr.bf16.gmra.mrb[0].mxu0 %v2094
        %v2249 = vpop.f32.mrb[0].mxu0
        %v2250 = vadd.f32 %v2117, %v2249
        %v2251 = vpop.f32.mrb[0].mxu0
        %v2252 = vpop.f32.mrb[0].mxu0
        %v2253 = vadd.f32 %v2117, %v2252
        %v2254 = vpop.f32.mrb[0].mxu0
        %2255 = vmatprep.mubr.bf16.mxu0 0
        %2256 = vmatmul.mubr.bf16.gmra.mrb[0].mxu0 %v2095
        %v2257 = vpop.f32.mrb[0].mxu0
        %v2258 = vadd.f32 %v2117, %v2257
        %v2259 = vpop.f32.mrb[0].mxu0
        %v2260 = vpop.f32.mrb[0].mxu0
        %v2261 = vadd.f32 %v2117, %v2260
        %v2262 = vpop.f32.mrb[0].mxu0
        %2263 = vdwg.mxu0
        %v2264 = vpack.c.bf16 %v2205, %v2202
        %v2265 = vpack.c.bf16 %v2213, %v2210
        %v2266 = vpack.c.bf16 %v2221, %v2218
        %v2267 = vpack.c.bf16 %v2229, %v2226
        %v2268 = vpack.c.bf16 %v2237, %v2234
        %v2269 = vpack.c.bf16 %v2245, %v2242
        %v2270 = vpack.c.bf16 %v2253, %v2250
        %v2271 = vpack.c.bf16 %v2261, %v2258
        %v2280 = vunpack.c.l.b16 %v2264
        %v2281 = vunpack.c.h.b16 %v2264
        %v2282 = vunpack.c.l.b16 %v2265
        %v2283 = vunpack.c.h.b16 %v2265
        %v2284 = vunpack.c.l.b16 %v2266
        %v2285 = vunpack.c.h.b16 %v2266
        %v2286 = vunpack.c.l.b16 %v2267
        %v2287 = vunpack.c.h.b16 %v2267
        %v2288 = vunpack.c.l.b16 %v2268
        %v2289 = vunpack.c.h.b16 %v2268
        %v2290 = vunpack.c.l.b16 %v2269
        %v2291 = vunpack.c.h.b16 %v2269
        %v2292 = vunpack.c.l.b16 %v2270
        %v2293 = vunpack.c.h.b16 %v2270
        %v2294 = vunpack.c.l.b16 %v2271
        %v2295 = vunpack.c.h.b16 %v2271
        %v2296 = vpack.c.b16 %v2280, %v2280
        %v2297 = vpack.c.b16 %v2281, %v2281
        %v2298 = vpack.c.b16 %v2282, %v2282
        %v2299 = vpack.c.b16 %v2283, %v2283
        %v2300 = vpack.c.b16 %v2284, %v2284
        %v2301 = vpack.c.b16 %v2285, %v2285
        %v2302 = vpack.c.b16 %v2286, %v2286
        %v2303 = vpack.c.b16 %v2287, %v2287
        %v2304 = vpack.c.b16 %v2288, %v2288
        %v2305 = vpack.c.b16 %v2289, %v2289
        %v2306 = vpack.c.b16 %v2290, %v2290
        %v2307 = vpack.c.b16 %v2291, %v2291
        %v2308 = vpack.c.b16 %v2292, %v2292
        %v2309 = vpack.c.b16 %v2293, %v2293
        %v2310 = vpack.c.b16 %v2294, %v2294
        %v2311 = vpack.c.b16 %v2295, %v2295
        %2328 = vst [vmem:[%s285] sm:$0xf] %v2296
        %2329 = vst [vmem:[%s285 + $0x4] sm:$0xf] %v2297
        %2330 = vst [vmem:[%s285 + $0x8] sm:$0xf] %v2298
        %2331 = vst [vmem:[%s285 + $0xc] sm:$0xf] %v2299
        %2332 = vst [vmem:[%s285 + $0x10] sm:$0xf] %v2300
        %2333 = vst [vmem:[%s285 + $0x14] sm:$0xf] %v2301
        %2334 = vst [vmem:[%s285 + $0x18] sm:$0xf] %v2302
        %2335 = vst [vmem:[%s285 + $0x1c] sm:$0xf] %v2303
        %2336 = vst [vmem:[%s285 + $0x20] sm:$0xf] %v2304
        %2337 = vst [vmem:[%s285 + $0x24] sm:$0xf] %v2305
        %2338 = vst [vmem:[%s285 + $0x28] sm:$0xf] %v2306
        %2339 = vst [vmem:[%s285 + $0x2c] sm:$0xf] %v2307
        %2340 = vst [vmem:[%s285 + $0x30] sm:$0xf] %v2308
        %2341 = vst [vmem:[%s285 + $0x34] sm:$0xf] %v2309
        %2342 = vst [vmem:[%s285 + $0x38] sm:$0xf] %v2310
        %2343 = vst [vmem:[%s285 + $0x3c] sm:$0xf] %v2311
        %s2344 = sand.u32 %s155, 1
        %s2345 = scalar_lea.sflag [#allocation6], %s2344
        %s2346 = sand.u32 %s155, 1
        %s2347 = smul.addr %s2346, 64
        %s2348 = scalar_lea.vmem [#allocation10], %s2347
        // Predicated region
        $region69: #{tpu_custom_call.1} parent=39 // pred_check
          %p2349 = pneg %p165
        $region70: #{tpu_custom_call.1} parent=39 // pred_check_branch
          %2351 = sbr.rel (%p2349) target = $region72
        $region71: #{tpu_custom_call.1} parent=39 // pred_region
          %s2352 = smul.u32 8, %s28
          %s2354 = ssub.s32 1024, 1024
          %2355 = vsyncadd %s2345, %s2354
          %s2356 = smul.addr %s2352, 2
          %s2357 = smul.addr %s27, 32
          %s2358 = sadd.s32 %s2356, %s2357
          %s2359 = smul.addr %s2358, 64
          %s2360 = scalar_lea.hbm %s5, %s2359
          %s2361 = sshll.u32 %s2348, 4
          %s2362 = int_to_ptr.vmem [resolvable:$true] %s2361
          %2367 = dma.vmem_to_hbm [thread:$0]  %s2362, 1024, %s2360, %s2345, 64, 64, 4
        $region72: #{tpu_custom_call.1} parent=39 // pred_fallthru
          _
      $region40: #{tpu_custom_call.1} parent=5 // pred_fallthru
        _
      %p2368 = scmp.le.s32.totalorder 2, %s18
      // Predicated region
      $region73: #{tpu_custom_call.1} parent=5 // pred_check
        %p2369 = pneg %p2368
      $region74: #{tpu_custom_call.1} parent=5 // pred_check_branch
        %2371 = sbr.rel (%p2369) target = $region76
      $region75: #{tpu_custom_call.1} parent=5 // pred_region
        %s2372 = ssub.s32 %s18, 2
        // Predicated region
        $region77: #{tpu_custom_call.1} parent=75 // pred_check
          %p2373 = pneg %p171
        $region78: #{tpu_custom_call.1} parent=75 // pred_check_branch
          %2375 = sbr.rel (%p2373) target = $region80
        $region79: #{tpu_custom_call.1} parent=75 // pred_region
          %s2376 = sand.u32 %s156, 1
          %s2377 = scalar_lea.sflag [#allocation6], %s2376
          %s2378 = sand.u32 %s156, 1
          %s2379 = smul.addr %s2378, 64
          %s2380 = scalar_lea.vmem [#allocation10], %s2379
          %2381 = dma.done %s2377, 1024
        $region80: #{tpu_custom_call.1} parent=75 // pred_fallthru
          _
      $region76: #{tpu_custom_call.1} parent=5 // pred_fallthru
        _
    $region6: #{tpu_custom_call.1} parent=1 // loop_footer
      %s22 = sadd.s32 1, %s18
    $region7: #{tpu_custom_call.1} parent=1 // loop_footer_branch
      %17 = sbr.rel target = $region3
    $region8: #{tpu_custom_call.1} parent=1 // loop_exit
      _
    %2382 = vsyncpa [#allocation5], 1
    %s2383 = scalar_lea.sflag [#allocation5], 1
    %2384 = vsyncpa %s2383, 1
    %2385 = vsyncpa [#allocation8], 1
    %2386 = vsyncpa [#allocation6], 1
    %s2387 = scalar_lea.sflag [#allocation6], 1
    %2388 = vsyncpa %s2387, 1

</llo_original>
